<compile_context>
chip_gen: v7x
topology: tpu7x:2x2x1
jax: 0.10.0
libtpu: 0.0.40
codegen_flags: <defaults>
</compile_context>

<pallas_src>
import functools

import jax
import jax.numpy as jnp
from jax import lax
from jax.experimental import pallas as pl
from jax.experimental.pallas import tpu as pltpu

EPS = 1e-5


def _round_up(x, m):
    return (x + m - 1) // m * m


def _onehot_graphs(bid_row, g_pad, t):
    """[G_pad, T] one-hot of per-edge graph ids (edges on lanes, graphs on sublanes)."""
    g_iota = lax.broadcasted_iota(jnp.int32, (g_pad, t), 0)
    return (g_iota == bid_row).astype(jnp.float32)


def _seg_sum(x, onehot):
    """x: [C, T] -> per-graph sums [C, G_pad] by contracting the edge-lane axis."""
    return lax.dot_general(x, onehot, (((1,), (1,)), ((), ())),
                           preferred_element_type=jnp.float32)


def _layer1(f12_ref, w1_ref, b1_ref):
    """h1^T = W1^T @ f12^T + b1   (bf16 stream up-cast to f32, f32 accumulation)."""
    return (jnp.dot(w1_ref[...], f12_ref[...].astype(jnp.float32),
                    preferred_element_type=jnp.float32) + b1_ref[...])


def _apply_norm_relu(h, coef_ref, onehot, c):
    """Per-edge affine from precomputed per-graph [inv_std; -mean*inv_std] + ReLU."""
    coef_e = jnp.dot(coef_ref[...], onehot,
                     preferred_element_type=jnp.float32)            # [2c, T]
    return jnp.maximum(h * coef_e[:c, :] + coef_e[c:, :], 0.0)


# --------------------------------------------------------------------------- kernels
def _stats1_kernel(f12_ref, bid_ref, w1_ref, b1_ref, out_ref, *, g_pad):
    t = f12_ref.shape[1]
    c1 = w1_ref.shape[0]
    onehot = _onehot_graphs(bid_ref[...], g_pad, t)                  # [G_pad, T]
    h1 = _layer1(f12_ref, w1_ref, b1_ref)                            # [4H, T]
    # Sublane-aligned slice writes (c1 is a multiple of 8): no concat temporary.
    out_ref[0, :c1, :] = _seg_sum(h1, onehot)
    out_ref[0, c1:, :] = _seg_sum(h1 * h1, onehot)


def _stats2_kernel(f12_ref, bid_ref, w1_ref, b1_ref, coef1_ref, w2_ref, b2_ref,
                   out_ref, *, g_pad):
    t = f12_ref.shape[1]
    c1 = w1_ref.shape[0]
    c2 = w2_ref.shape[0]
    onehot = _onehot_graphs(bid_ref[...], g_pad, t)
    h1 = _apply_norm_relu(_layer1(f12_ref, w1_ref, b1_ref), coef1_ref, onehot, c1)
    h2 = (jnp.dot(w2_ref[...], h1, preferred_element_type=jnp.float32) + b2_ref[...])
    out_ref[0, :c2, :] = _seg_sum(h2, onehot)
    out_ref[0, c2:, :] = _seg_sum(h2 * h2, onehot)


def _emit_kernel(f12_ref, bid_ref, w1_ref, b1_ref, coef1_ref, w2_ref, b2_ref,
                 coef2_ref, w3_ref, b3_ref, out_ref, *, g_pad):
    t = f12_ref.shape[1]
    c1 = w1_ref.shape[0]
    c2 = w2_ref.shape[0]
    onehot = _onehot_graphs(bid_ref[...], g_pad, t)
    h1 = _apply_norm_relu(_layer1(f12_ref, w1_ref, b1_ref), coef1_ref, onehot, c1)
    h2 = (jnp.dot(w2_ref[...], h1, preferred_element_type=jnp.float32) + b2_ref[...])
    h2 = _apply_norm_relu(h2, coef2_ref, onehot, c2)
    # Lane-dense [1, T] logits.
    out_ref[...] = (jnp.dot(w3_ref[...], h2, preferred_element_type=jnp.float32)
                    + b3_ref[...])


# --------------------------------------------------------------------------- wrapper
def _finalize_norm_coef(stats, counts, c):
    """[2c, G_pad] sums/sumsq + counts -> stacked [inv_std; -mean*inv_std]."""
    inv_n = 1.0 / counts                                             # [G_pad]
    mean = stats[:c] * inv_n
    ex2 = stats[c:] * inv_n
    var = jnp.maximum(ex2 - mean * mean, 0.0)                        # biased variance
    inv_std = lax.rsqrt(var + EPS)
    return jnp.concatenate([inv_std, -mean * inv_std], axis=0)       # [2c, G_pad]


@functools.partial(jax.jit, static_argnames=("num_graphs", "tile_e"))
def extractor_mlp_forward(emb, edge_index, batch, params, num_graphs, tile_e=4096):
    """3-pass Pallas forward: layer-1 stats, layer-2 stats, lane-dense emit."""
    w1, b1, w2, b2, w3, b3 = params
    col, row = edge_index[0], edge_index[1]
    h_dim = emb.shape[1]
    e = col.shape[0]
    c1 = w1.shape[1]                        # 4H
    c2 = w2.shape[1]                        # H
    two_h = 2 * h_dim

    # bf16 stream of the gathered, stacked edge features (transposed: [2H, E]).
    emb_t = emb.astype(jnp.bfloat16).T                                # [H, N]
    f12t = jnp.concatenate([jnp.take(emb_t, col, axis=1),
                            jnp.take(emb_t, row, axis=1)], axis=0)    # [2H, E] bf16
    batch_e = jnp.take(batch, col, axis=0).astype(jnp.int32)          # [E]

    # Pad the edge axis to a lane-aligned tile multiple.  Padded edges get graph id
    # == num_graphs; their (finite) junk never reaches real output lanes.
    tile = min(tile_e, _round_up(e, 128))
    e_pad = _round_up(e, tile)
    pad = e_pad - e
    f12t = jnp.pad(f12t, ((0, 0), (0, pad)))
    bid_row = jnp.pad(batch_e, (0, pad), constant_values=num_graphs)[None, :]
    n_tiles = e_pad // tile

    # Lane-pad the graph axis so stats / coef / one-hot tensors are lane-dense.
    g_pad = _round_up(num_graphs, 128)

    # Transposed f32 parameters (out-features on sublanes, contraction on lanes).
    w1t = w1.T.astype(jnp.float32)                                    # [4H, 2H]
    b1c = b1.reshape(-1, 1).astype(jnp.float32)                       # [4H, 1]
    w2t = w2.T.astype(jnp.float32)                                    # [H, 4H]
    b2c = b2.reshape(-1, 1).astype(jnp.float32)                       # [H, 1]
    w3t = w3.T.astype(jnp.float32)                                    # [1, H]
    b3c = b3.reshape(1, 1).astype(jnp.float32)                        # [1, 1]

    cparams = pltpu.CompilerParams(
        dimension_semantics=("parallel",),            # megacore-shardable on v7x
        vmem_limit_bytes=32 * 1024 * 1024)            # raises v5e's 16 MiB default

    # TODO(synk): add pipeline_mode=pl.Buffered(3) here if profiling shows exposed
    # input DMA at tile boundaries.
    edge_block = pl.BlockSpec((two_h, tile), lambda i: (0, i))
    bid_block = pl.BlockSpec((1, tile), lambda i: (0, i))

    def const_spec(shape):
        return pl.BlockSpec(shape, lambda i, _s=shape: (0,) * len(_s))

    # ---- pass 1: per-graph sum / sum-of-squares of layer-1 pre-activations --------
    stats1_parts = pl.pallas_call(
        functools.partial(_stats1_kernel, g_pad=g_pad),
        out_shape=jax.ShapeDtypeStruct((n_tiles, 2 * c1, g_pad), jnp.float32),
        grid_spec=pltpu.PrefetchScalarGridSpec(
            num_scalar_prefetch=0, grid=(n_tiles,),
            in_specs=[edge_block, bid_block,
                      const_spec((c1, two_h)), const_spec((c1, 1))],
            out_specs=pl.BlockSpec((1, 2 * c1, g_pad), lambda i: (i, 0, 0))),
        compiler_params=cparams,
    )(f12t, bid_row, w1t, b1c)

    counts = jax.ops.segment_sum(jnp.ones((e,), jnp.float32), batch_e,
                                 num_segments=num_graphs)
    counts = jnp.maximum(counts, 1.0)
    counts_pad = jnp.pad(counts, (0, g_pad - num_graphs), constant_values=1.0)

    stats1 = jnp.sum(stats1_parts, axis=0)                            # [2*4H, G_pad]
    coef1 = _finalize_norm_coef(stats1, counts_pad, c1)               # [2*4H, G_pad]

    # ---- pass 2: per-graph stats of layer-2 pre-activations -----------------------
    stats2_parts = pl.pallas_call(
        functools.partial(_stats2_kernel, g_pad=g_pad),
        out_shape=jax.ShapeDtypeStruct((n_tiles, 2 * c2, g_pad), jnp.float32),
        grid_spec=pltpu.PrefetchScalarGridSpec(
            num_scalar_prefetch=0, grid=(n_tiles,),
            in_specs=[edge_block, bid_block,
                      const_spec((c1, two_h)), const_spec((c1, 1)),
                      const_spec((2 * c1, g_pad)),
                      const_spec((c2, c1)), const_spec((c2, 1))],
            out_specs=pl.BlockSpec((1, 2 * c2, g_pad), lambda i: (i, 0, 0))),
        compiler_params=cparams,
    )(f12t, bid_row, w1t, b1c, coef1, w2t, b2c)

    stats2 = jnp.sum(stats2_parts, axis=0)                            # [2*H, G_pad]
    coef2 = _finalize_norm_coef(stats2, counts_pad, c2)               # [2*H, G_pad]

    # ---- pass 3: emit lane-dense logits --------------------------------------------
    logits = pl.pallas_call(
        functools.partial(_emit_kernel, g_pad=g_pad),
        out_shape=jax.ShapeDtypeStruct((1, e_pad), jnp.float32),
        grid_spec=pltpu.PrefetchScalarGridSpec(
            num_scalar_prefetch=0, grid=(n_tiles,),
            in_specs=[edge_block, bid_block,
                      const_spec((c1, two_h)), const_spec((c1, 1)),
                      const_spec((2 * c1, g_pad)),
                      const_spec((c2, c1)), const_spec((c2, 1)),
                      const_spec((2 * c2, g_pad)),
                      const_spec((1, c2)), const_spec((1, 1))],
            out_specs=pl.BlockSpec((1, tile), lambda i: (0, i))),
        compiler_params=cparams,
    )(f12t, bid_row, w1t, b1c, coef1, w2t, b2c, coef2, w3t, b3c)

    return logits[0, :e][:, None]                                     # [E, 1]


# --------------------------------------------------------------------------- reference
def ref_forward(emb, edge_index, batch, params, num_graphs):
    """Pure-JAX reference matching the PyTorch/PyG semantics (f32 math)."""
    w1, b1, w2, b2, w3, b3 = params
    col, row = edge_index[0], edge_index[1]
    f12 = jnp.concatenate([emb[col], emb[row]], axis=-1)
    be = batch[col]

    def inorm(h):
        ones = jnp.ones((h.shape[0],), jnp.float32)
        counts = jnp.maximum(jax.ops.segment_sum(ones, be, num_graphs), 1.0)[:, None]
        mean = jax.ops.segment_sum(h, be, num_graphs) / counts
        hc = h - mean[be]
        var = jax.ops.segment_sum(hc * hc, be, num_graphs) / counts
        return hc / jnp.sqrt(var[be] + EPS)

    x = f12 @ w1 + b1
    x = jnp.maximum(inorm(x), 0.0)
    x = x @ w2 + b2
    x = jnp.maximum(inorm(x), 0.0)
    return x @ w3 + b3


def init_linear(key, fan_in, fan_out):
    """PyTorch nn.Linear-style uniform init, weight stored [in, out]."""
    kw, kb = jax.random.split(key)
    bound = 1.0 / jnp.sqrt(jnp.float32(fan_in))
    w = jax.random.uniform(kw, (fan_in, fan_out), jnp.float32, -bound, bound)
    b = jax.random.uniform(kb, (1, fan_out), jnp.float32, -bound, bound)
    return w, b


if __name__ == "__main__":
    key = jax.random.PRNGKey(0)

    # Small graph-batch consistent with the module:
    H = 16                      # config.model.dim_hidden
    G = 2                       # graphs in the batch
    NODES_PER_GRAPH = 6
    EDGES_PER_GRAPH = 12
    N = G * NODES_PER_GRAPH
    E = G * EDGES_PER_GRAPH

    key, k_emb = jax.random.split(key)
    emb = jax.random.normal(k_emb, (N, H), jnp.float32)
    batch = jnp.repeat(jnp.arange(G, dtype=jnp.int32), NODES_PER_GRAPH)

    # Edges confined to their own graph (standard GNN batching).
    cols, rows = [], []
    for g in range(G):
        key, kc, kr = jax.random.split(key, 3)
        off = g * NODES_PER_GRAPH
        cols.append(jax.random.randint(kc, (EDGES_PER_GRAPH,), 0, NODES_PER_GRAPH) + off)
        rows.append(jax.random.randint(kr, (EDGES_PER_GRAPH,), 0, NODES_PER_GRAPH) + off)
    edge_index = jnp.stack([jnp.concatenate(cols), jnp.concatenate(rows)]).astype(jnp.int32)

    # MLP([2H, 4H, H, 1]) parameters (learn_edge_att=True path).
    key, k1, k2, k3 = jax.random.split(key, 4)
    w1, b1 = init_linear(k1, 2 * H, 4 * H)
    w2, b2 = init_linear(k2, 4 * H, H)
    w3, b3 = init_linear(k3, H, 1)
    params = (w1, b1, w2, b2, w3, b3)

    out = extractor_mlp_forward(emb, edge_index, batch, params, num_graphs=G)
    out = jax.block_until_ready(out)

    # The kernel streams the edge features in bf16 (per perf review); compare against
    # the f32 reference evaluated on the same bf16-rounded embeddings so the only
    # remaining differences are f32 accumulation order (~1e-6).
    emb_q = emb.astype(jnp.bfloat16).astype(jnp.float32)
    ref = ref_forward(emb_q, edge_index, batch, params, G)

    assert out.shape == (E, 1), out.shape
    assert jnp.allclose(out, ref, atol=1e-4, rtol=1e-4), (
        f"max err {jnp.max(jnp.abs(out - ref))}")

    print("KERNEL_OK")
</pallas_src>

<mosaic_0001>
module attributes {stable_mosaic.version = 11 : i64} {
  func.func @_stats1_kernel(%arg0: i32, %arg1: memref<32x128xbf16, #tpu.memory_space<vmem>>, %arg2: memref<1x128xi32, #tpu.memory_space<vmem>>, %arg3: memref<64x32xf32, #tpu.memory_space<vmem>>, %arg4: memref<64x1xf32, #tpu.memory_space<vmem>>, %arg5: memref<1x128x128xf32, #tpu.memory_space<vmem>>) attributes {dimension_semantics = [#tpu.dimension_semantics<parallel>], iteration_bounds = array<i64: 1>, scalar_prefetch = 0 : i64, scratch_operands = 0 : i64, tpu.core_type = #tpu.core_type<tc>, window_params = [{transform_indices = @transform_0, window_bounds = array<i64: 32, 128>}, {transform_indices = @transform_1, window_bounds = array<i64: 1, 128>}, {pipeline_mode = #tpu.pipeline_mode<synchronous>, transform_indices = @transform_2, window_bounds = array<i64: 64, 32>}, {pipeline_mode = #tpu.pipeline_mode<synchronous>, transform_indices = @transform_3, window_bounds = array<i64: 64, 1>}, {transform_indices = @transform_4, window_bounds = array<i64: 1, 128, 128>}]} {
    %c0 = arith.constant 0 : index
    %c0_0 = arith.constant 0 : index
    %0 = vector.load %arg2[%c0, %c0_0] : memref<1x128xi32, #tpu.memory_space<vmem>>, vector<1x128xi32>
    %1 = tpu.iota {dimensions = array<i32: 0>} : vector<128x128xi32>
    %2 = vector.broadcast %0 : vector<1x128xi32> to vector<128x128xi32>
    %3 = arith.cmpi eq, %1, %2 : vector<128x128xi32>
    %4 = arith.extui %3 : vector<128x128xi1> to vector<128x128xi32>
    %5 = arith.sitofp %4 : vector<128x128xi32> to vector<128x128xf32>
    %c0_1 = arith.constant 0 : index
    %c0_2 = arith.constant 0 : index
    %6 = vector.load %arg3[%c0_1, %c0_2] : memref<64x32xf32, #tpu.memory_space<vmem>>, vector<64x32xf32>
    %c0_3 = arith.constant 0 : index
    %c0_4 = arith.constant 0 : index
    %7 = vector.load %arg1[%c0_3, %c0_4] : memref<32x128xbf16, #tpu.memory_space<vmem>>, vector<32x128xbf16>
    %8 = arith.extf %7 : vector<32x128xbf16> to vector<32x128xf32>
    %cst = arith.constant dense<0.000000e+00> : vector<64x128xf32>
    %9 = tpu.matmul %6, %8, %cst {dimension_numbers = #tpu.dot_dimension_numbers<[1], [0], [0], [1], [0, 0, 1, 1], [], []>} : vector<64x32xf32>, vector<32x128xf32>, vector<64x128xf32> -> vector<64x128xf32>
    %c0_5 = arith.constant 0 : index
    %c0_6 = arith.constant 0 : index
    %10 = vector.load %arg4[%c0_5, %c0_6] : memref<64x1xf32, #tpu.memory_space<vmem>>, vector<64x1xf32>
    %11 = vector.broadcast %10 : vector<64x1xf32> to vector<64x128xf32>
    %12 = arith.addf %9, %11 : vector<64x128xf32>
    %cst_7 = arith.constant dense<0.000000e+00> : vector<64x128xf32>
    %13 = tpu.matmul %12, %5, %cst_7 {dimension_numbers = #tpu.dot_dimension_numbers<[1], [1], [0], [0], [0, 0, 1, 0], [], []>} : vector<64x128xf32>, vector<128x128xf32>, vector<64x128xf32> -> vector<64x128xf32>
    %c0_8 = arith.constant 0 : index
    %c0_9 = arith.constant 0 : index
    %c0_10 = arith.constant 0 : index
    %14 = vector.load %arg5[%c0_8, %c0_9, %c0_10] : memref<1x128x128xf32, #tpu.memory_space<vmem>>, vector<1x64x128xf32>
    %15 = vector.shape_cast %14 : vector<1x64x128xf32> to vector<64x128xf32>
    %16 = vector.shape_cast %13 : vector<64x128xf32> to vector<1x64x128xf32>
    tpu.vector_store %arg5[%c0_8, %c0_9, %c0_10], %16 {strides = array<i32>} : memref<1x128x128xf32, #tpu.memory_space<vmem>>, vector<1x64x128xf32>,
    %17 = arith.mulf %12, %12 : vector<64x128xf32>
    %cst_11 = arith.constant dense<0.000000e+00> : vector<64x128xf32>
    %18 = tpu.matmul %17, %5, %cst_11 {dimension_numbers = #tpu.dot_dimension_numbers<[1], [1], [0], [0], [0, 0, 1, 0], [], []>} : vector<64x128xf32>, vector<128x128xf32>, vector<64x128xf32> -> vector<64x128xf32>
    %c0_12 = arith.constant 0 : index
    %c64 = arith.constant 64 : index
    %c0_13 = arith.constant 0 : index
    %19 = vector.load %arg5[%c0_12, %c64, %c0_13] : memref<1x128x128xf32, #tpu.memory_space<vmem>>, vector<1x64x128xf32>
    %20 = vector.shape_cast %19 : vector<1x64x128xf32> to vector<64x128xf32>
    %21 = vector.shape_cast %18 : vector<64x128xf32> to vector<1x64x128xf32>
    tpu.vector_store %arg5[%c0_12, %c64, %c0_13], %21 {strides = array<i32>} : memref<1x128x128xf32, #tpu.memory_space<vmem>>, vector<1x64x128xf32>,
    return
  }
  func.func @transform_0(%arg0: i32) -> (i32, i32) {
    %c0_i32 = arith.constant 0 : i32
    %c0_i32_0 = arith.constant 0 : i32
    return %c0_i32, %arg0 : i32, i32
  }
  func.func @transform_1(%arg0: i32) -> (i32, i32) {
    %c0_i32 = arith.constant 0 : i32
    %c0_i32_0 = arith.constant 0 : i32
    return %c0_i32, %arg0 : i32, i32
  }
  func.func @transform_2(%arg0: i32) -> (i32, i32) {
    %c0_i32 = arith.constant 0 : i32
    %c0_i32_0 = arith.constant 0 : i32
    %c0_i32_1 = arith.constant 0 : i32
    return %c0_i32, %c0_i32_0 : i32, i32
  }
  func.func @transform_3(%arg0: i32) -> (i32, i32) {
    %c0_i32 = arith.constant 0 : i32
    %c0_i32_0 = arith.constant 0 : i32
    %c0_i32_1 = arith.constant 0 : i32
    return %c0_i32, %c0_i32_0 : i32, i32
  }
  func.func @transform_4(%arg0: i32) -> (i32, i32, i32) {
    %c0_i32 = arith.constant 0 : i32
    %c0_i32_0 = arith.constant 0 : i32
    %c0_i32_1 = arith.constant 0 : i32
    return %arg0, %c0_i32, %c0_i32_0 : i32, i32, i32
  }
}

module attributes {stable_mosaic.version = 11 : i64} {
  func.func @_stats2_kernel(%arg0: i32, %arg1: memref<32x128xbf16, #tpu.memory_space<vmem>>, %arg2: memref<1x128xi32, #tpu.memory_space<vmem>>, %arg3: memref<64x32xf32, #tpu.memory_space<vmem>>, %arg4: memref<64x1xf32, #tpu.memory_space<vmem>>, %arg5: memref<128x128xf32, #tpu.memory_space<vmem>>, %arg6: memref<16x64xf32, #tpu.memory_space<vmem>>, %arg7: memref<16x1xf32, #tpu.memory_space<vmem>>, %arg8: memref<1x32x128xf32, #tpu.memory_space<vmem>>) attributes {dimension_semantics = [#tpu.dimension_semantics<parallel>], iteration_bounds = array<i64: 1>, scalar_prefetch = 0 : i64, scratch_operands = 0 : i64, tpu.core_type = #tpu.core_type<tc>, window_params = [{transform_indices = @transform_0, window_bounds = array<i64: 32, 128>}, {transform_indices = @transform_1, window_bounds = array<i64: 1, 128>}, {pipeline_mode = #tpu.pipeline_mode<synchronous>, transform_indices = @transform_2, window_bounds = array<i64: 64, 32>}, {pipeline_mode = #tpu.pipeline_mode<synchronous>, transform_indices = @transform_3, window_bounds = array<i64: 64, 1>}, {pipeline_mode = #tpu.pipeline_mode<synchronous>, transform_indices = @transform_4, window_bounds = array<i64: 128, 128>}, {pipeline_mode = #tpu.pipeline_mode<synchronous>, transform_indices = @transform_5, window_bounds = array<i64: 16, 64>}, {pipeline_mode = #tpu.pipeline_mode<synchronous>, transform_indices = @transform_6, window_bounds = array<i64: 16, 1>}, {transform_indices = @transform_7, window_bounds = array<i64: 1, 32, 128>}]} {
    %c0 = arith.constant 0 : index
    %c0_0 = arith.constant 0 : index
    %0 = vector.load %arg2[%c0, %c0_0] : memref<1x128xi32, #tpu.memory_space<vmem>>, vector<1x128xi32>
    %1 = tpu.iota {dimensions = array<i32: 0>} : vector<128x128xi32>
    %2 = vector.broadcast %0 : vector<1x128xi32> to vector<128x128xi32>
    %3 = arith.cmpi eq, %1, %2 : vector<128x128xi32>
    %4 = arith.extui %3 : vector<128x128xi1> to vector<128x128xi32>
    %5 = arith.sitofp %4 : vector<128x128xi32> to vector<128x128xf32>
    %c0_1 = arith.constant 0 : index
    %c0_2 = arith.constant 0 : index
    %6 = vector.load %arg3[%c0_1, %c0_2] : memref<64x32xf32, #tpu.memory_space<vmem>>, vector<64x32xf32>
    %c0_3 = arith.constant 0 : index
    %c0_4 = arith.constant 0 : index
    %7 = vector.load %arg1[%c0_3, %c0_4] : memref<32x128xbf16, #tpu.memory_space<vmem>>, vector<32x128xbf16>
    %8 = arith.extf %7 : vector<32x128xbf16> to vector<32x128xf32>
    %cst = arith.constant dense<0.000000e+00> : vector<64x128xf32>
    %9 = tpu.matmul %6, %8, %cst {dimension_numbers = #tpu.dot_dimension_numbers<[1], [0], [0], [1], [0, 0, 1, 1], [], []>} : vector<64x32xf32>, vector<32x128xf32>, vector<64x128xf32> -> vector<64x128xf32>
    %c0_5 = arith.constant 0 : index
    %c0_6 = arith.constant 0 : index
    %10 = vector.load %arg4[%c0_5, %c0_6] : memref<64x1xf32, #tpu.memory_space<vmem>>, vector<64x1xf32>
    %11 = vector.broadcast %10 : vector<64x1xf32> to vector<64x128xf32>
    %12 = arith.addf %9, %11 : vector<64x128xf32>
    %c0_7 = arith.constant 0 : index
    %c0_8 = arith.constant 0 : index
    %13 = vector.load %arg5[%c0_7, %c0_8] : memref<128x128xf32, #tpu.memory_space<vmem>>, vector<128x128xf32>
    %cst_9 = arith.constant dense<0.000000e+00> : vector<128x128xf32>
    %14 = tpu.matmul %13, %5, %cst_9 {dimension_numbers = #tpu.dot_dimension_numbers<[1], [0], [0], [1], [0, 0, 1, 1], [], []>} : vector<128x128xf32>, vector<128x128xf32>, vector<128x128xf32> -> vector<128x128xf32>
    %15 = vector.extract_strided_slice %14 {offsets = [0, 0], sizes = [64, 128], strides = [1, 1]} : vector<128x128xf32> to vector<64x128xf32>
    %16 = arith.mulf %12, %15 : vector<64x128xf32>
    %17 = vector.extract_strided_slice %14 {offsets = [64, 0], sizes = [64, 128], strides = [1, 1]} : vector<128x128xf32> to vector<64x128xf32>
    %18 = arith.addf %16, %17 : vector<64x128xf32>
    %cst_10 = arith.constant 0.000000e+00 : f32
    %19 = vector.broadcast %cst_10 : f32 to vector<64x128xf32>
    %20 = arith.maximumf %18, %19 : vector<64x128xf32>
    %c0_11 = arith.constant 0 : index
    %c0_12 = arith.constant 0 : index
    %21 = vector.load %arg6[%c0_11, %c0_12] : memref<16x64xf32, #tpu.memory_space<vmem>>, vector<16x64xf32>
    %cst_13 = arith.constant dense<0.000000e+00> : vector<16x128xf32>
    %22 = tpu.matmul %21, %20, %cst_13 {dimension_numbers = #tpu.dot_dimension_numbers<[1], [0], [0], [1], [0, 0, 1, 1], [], []>} : vector<16x64xf32>, vector<64x128xf32>, vector<16x128xf32> -> vector<16x128xf32>
    %c0_14 = arith.constant 0 : index
    %c0_15 = arith.constant 0 : index
    %23 = vector.load %arg7[%c0_14, %c0_15] : memref<16x1xf32, #tpu.memory_space<vmem>>, vector<16x1xf32>
    %24 = vector.broadcast %23 : vector<16x1xf32> to vector<16x128xf32>
    %25 = arith.addf %22, %24 : vector<16x128xf32>
    %cst_16 = arith.constant dense<0.000000e+00> : vector<16x128xf32>
    %26 = tpu.matmul %25, %5, %cst_16 {dimension_numbers = #tpu.dot_dimension_numbers<[1], [1], [0], [0], [0, 0, 1, 0], [], []>} : vector<16x128xf32>, vector<128x128xf32>, vector<16x128xf32> -> vector<16x128xf32>
    %c0_17 = arith.constant 0 : index
    %c0_18 = arith.constant 0 : index
    %c0_19 = arith.constant 0 : index
    %27 = vector.load %arg8[%c0_17, %c0_18, %c0_19] : memref<1x32x128xf32, #tpu.memory_space<vmem>>, vector<1x16x128xf32>
    %28 = vector.shape_cast %27 : vector<1x16x128xf32> to vector<16x128xf32>
    %29 = vector.shape_cast %26 : vector<16x128xf32> to vector<1x16x128xf32>
    tpu.vector_store %arg8[%c0_17, %c0_18, %c0_19], %29 {strides = array<i32>} : memref<1x32x128xf32, #tpu.memory_space<vmem>>, vector<1x16x128xf32>,
    %30 = arith.mulf %25, %25 : vector<16x128xf32>
    %cst_20 = arith.constant dense<0.000000e+00> : vector<16x128xf32>
    %31 = tpu.matmul %30, %5, %cst_20 {dimension_numbers = #tpu.dot_dimension_numbers<[1], [1], [0], [0], [0, 0, 1, 0], [], []>} : vector<16x128xf32>, vector<128x128xf32>, vector<16x128xf32> -> vector<16x128xf32>
    %c0_21 = arith.constant 0 : index
    %c16 = arith.constant 16 : index
    %c0_22 = arith.constant 0 : index
    %32 = vector.load %arg8[%c0_21, %c16, %c0_22] : memref<1x32x128xf32, #tpu.memory_space<vmem>>, vector<1x16x128xf32>
    %33 = vector.shape_cast %32 : vector<1x16x128xf32> to vector<16x128xf32>
    %34 = vector.shape_cast %31 : vector<16x128xf32> to vector<1x16x128xf32>
    tpu.vector_store %arg8[%c0_21, %c16, %c0_22], %34 {strides = array<i32>} : memref<1x32x128xf32, #tpu.memory_space<vmem>>, vector<1x16x128xf32>,
    return
  }
  func.func @transform_0(%arg0: i32) -> (i32, i32) {
    %c0_i32 = arith.constant 0 : i32
    %c0_i32_0 = arith.constant 0 : i32
    return %c0_i32, %arg0 : i32, i32
  }
  func.func @transform_1(%arg0: i32) -> (i32, i32) {
    %c0_i32 = arith.constant 0 : i32
    %c0_i32_0 = arith.constant 0 : i32
    return %c0_i32, %arg0 : i32, i32
  }
  func.func @transform_2(%arg0: i32) -> (i32, i32) {
    %c0_i32 = arith.constant 0 : i32
    %c0_i32_0 = arith.constant 0 : i32
    %c0_i32_1 = arith.constant 0 : i32
    return %c0_i32, %c0_i32_0 : i32, i32
  }
  func.func @transform_3(%arg0: i32) -> (i32, i32) {
    %c0_i32 = arith.constant 0 : i32
    %c0_i32_0 = arith.constant 0 : i32
    %c0_i32_1 = arith.constant 0 : i32
    return %c0_i32, %c0_i32_0 : i32, i32
  }
  func.func @transform_4(%arg0: i32) -> (i32, i32) {
    %c0_i32 = arith.constant 0 : i32
    %c0_i32_0 = arith.constant 0 : i32
    %c0_i32_1 = arith.constant 0 : i32
    return %c0_i32, %c0_i32_0 : i32, i32
  }
  func.func @transform_5(%arg0: i32) -> (i32, i32) {
    %c0_i32 = arith.constant 0 : i32
    %c0_i32_0 = arith.constant 0 : i32
    %c0_i32_1 = arith.constant 0 : i32
    return %c0_i32, %c0_i32_0 : i32, i32
  }
  func.func @transform_6(%arg0: i32) -> (i32, i32) {
    %c0_i32 = arith.constant 0 : i32
    %c0_i32_0 = arith.constant 0 : i32
    %c0_i32_1 = arith.constant 0 : i32
    return %c0_i32, %c0_i32_0 : i32, i32
  }
  func.func @transform_7(%arg0: i32) -> (i32, i32, i32) {
    %c0_i32 = arith.constant 0 : i32
    %c0_i32_0 = arith.constant 0 : i32
    %c0_i32_1 = arith.constant 0 : i32
    return %arg0, %c0_i32, %c0_i32_0 : i32, i32, i32
  }
}

module attributes {stable_mosaic.version = 11 : i64} {
  func.func @_emit_kernel(%arg0: i32, %arg1: memref<32x128xbf16, #tpu.memory_space<vmem>>, %arg2: memref<1x128xi32, #tpu.memory_space<vmem>>, %arg3: memref<64x32xf32, #tpu.memory_space<vmem>>, %arg4: memref<64x1xf32, #tpu.memory_space<vmem>>, %arg5: memref<128x128xf32, #tpu.memory_space<vmem>>, %arg6: memref<16x64xf32, #tpu.memory_space<vmem>>, %arg7: memref<16x1xf32, #tpu.memory_space<vmem>>, %arg8: memref<32x128xf32, #tpu.memory_space<vmem>>, %arg9: memref<1x16xf32, #tpu.memory_space<vmem>>, %arg10: memref<1x1xf32, #tpu.memory_space<vmem>>, %arg11: memref<1x128xf32, #tpu.memory_space<vmem>>) attributes {dimension_semantics = [#tpu.dimension_semantics<parallel>], iteration_bounds = array<i64: 1>, scalar_prefetch = 0 : i64, scratch_operands = 0 : i64, tpu.core_type = #tpu.core_type<tc>, window_params = [{transform_indices = @transform_0, window_bounds = array<i64: 32, 128>}, {transform_indices = @transform_1, window_bounds = array<i64: 1, 128>}, {pipeline_mode = #tpu.pipeline_mode<synchronous>, transform_indices = @transform_2, window_bounds = array<i64: 64, 32>}, {pipeline_mode = #tpu.pipeline_mode<synchronous>, transform_indices = @transform_3, window_bounds = array<i64: 64, 1>}, {pipeline_mode = #tpu.pipeline_mode<synchronous>, transform_indices = @transform_4, window_bounds = array<i64: 128, 128>}, {pipeline_mode = #tpu.pipeline_mode<synchronous>, transform_indices = @transform_5, window_bounds = array<i64: 16, 64>}, {pipeline_mode = #tpu.pipeline_mode<synchronous>, transform_indices = @transform_6, window_bounds = array<i64: 16, 1>}, {pipeline_mode = #tpu.pipeline_mode<synchronous>, transform_indices = @transform_7, window_bounds = array<i64: 32, 128>}, {pipeline_mode = #tpu.pipeline_mode<synchronous>, transform_indices = @transform_8, window_bounds = array<i64: 1, 16>}, {pipeline_mode = #tpu.pipeline_mode<synchronous>, transform_indices = @transform_9, window_bounds = array<i64: 1, 1>}, {transform_indices = @transform_10, window_bounds = array<i64: 1, 128>}]} {
    %c0 = arith.constant 0 : index
    %c0_0 = arith.constant 0 : index
    %0 = vector.load %arg2[%c0, %c0_0] : memref<1x128xi32, #tpu.memory_space<vmem>>, vector<1x128xi32>
    %1 = tpu.iota {dimensions = array<i32: 0>} : vector<128x128xi32>
    %2 = vector.broadcast %0 : vector<1x128xi32> to vector<128x128xi32>
    %3 = arith.cmpi eq, %1, %2 : vector<128x128xi32>
    %4 = arith.extui %3 : vector<128x128xi1> to vector<128x128xi32>
    %5 = arith.sitofp %4 : vector<128x128xi32> to vector<128x128xf32>
    %c0_1 = arith.constant 0 : index
    %c0_2 = arith.constant 0 : index
    %6 = vector.load %arg3[%c0_1, %c0_2] : memref<64x32xf32, #tpu.memory_space<vmem>>, vector<64x32xf32>
    %c0_3 = arith.constant 0 : index
    %c0_4 = arith.constant 0 : index
    %7 = vector.load %arg1[%c0_3, %c0_4] : memref<32x128xbf16, #tpu.memory_space<vmem>>, vector<32x128xbf16>
    %8 = arith.extf %7 : vector<32x128xbf16> to vector<32x128xf32>
    %cst = arith.constant dense<0.000000e+00> : vector<64x128xf32>
    %9 = tpu.matmul %6, %8, %cst {dimension_numbers = #tpu.dot_dimension_numbers<[1], [0], [0], [1], [0, 0, 1, 1], [], []>} : vector<64x32xf32>, vector<32x128xf32>, vector<64x128xf32> -> vector<64x128xf32>
    %c0_5 = arith.constant 0 : index
    %c0_6 = arith.constant 0 : index
    %10 = vector.load %arg4[%c0_5, %c0_6] : memref<64x1xf32, #tpu.memory_space<vmem>>, vector<64x1xf32>
    %11 = vector.broadcast %10 : vector<64x1xf32> to vector<64x128xf32>
    %12 = arith.addf %9, %11 : vector<64x128xf32>
    %c0_7 = arith.constant 0 : index
    %c0_8 = arith.constant 0 : index
    %13 = vector.load %arg5[%c0_7, %c0_8] : memref<128x128xf32, #tpu.memory_space<vmem>>, vector<128x128xf32>
    %cst_9 = arith.constant dense<0.000000e+00> : vector<128x128xf32>
    %14 = tpu.matmul %13, %5, %cst_9 {dimension_numbers = #tpu.dot_dimension_numbers<[1], [0], [0], [1], [0, 0, 1, 1], [], []>} : vector<128x128xf32>, vector<128x128xf32>, vector<128x128xf32> -> vector<128x128xf32>
    %15 = vector.extract_strided_slice %14 {offsets = [0, 0], sizes = [64, 128], strides = [1, 1]} : vector<128x128xf32> to vector<64x128xf32>
    %16 = arith.mulf %12, %15 : vector<64x128xf32>
    %17 = vector.extract_strided_slice %14 {offsets = [64, 0], sizes = [64, 128], strides = [1, 1]} : vector<128x128xf32> to vector<64x128xf32>
    %18 = arith.addf %16, %17 : vector<64x128xf32>
    %cst_10 = arith.constant 0.000000e+00 : f32
    %19 = vector.broadcast %cst_10 : f32 to vector<64x128xf32>
    %20 = arith.maximumf %18, %19 : vector<64x128xf32>
    %c0_11 = arith.constant 0 : index
    %c0_12 = arith.constant 0 : index
    %21 = vector.load %arg6[%c0_11, %c0_12] : memref<16x64xf32, #tpu.memory_space<vmem>>, vector<16x64xf32>
    %cst_13 = arith.constant dense<0.000000e+00> : vector<16x128xf32>
    %22 = tpu.matmul %21, %20, %cst_13 {dimension_numbers = #tpu.dot_dimension_numbers<[1], [0], [0], [1], [0, 0, 1, 1], [], []>} : vector<16x64xf32>, vector<64x128xf32>, vector<16x128xf32> -> vector<16x128xf32>
    %c0_14 = arith.constant 0 : index
    %c0_15 = arith.constant 0 : index
    %23 = vector.load %arg7[%c0_14, %c0_15] : memref<16x1xf32, #tpu.memory_space<vmem>>, vector<16x1xf32>
    %24 = vector.broadcast %23 : vector<16x1xf32> to vector<16x128xf32>
    %25 = arith.addf %22, %24 : vector<16x128xf32>
    %c0_16 = arith.constant 0 : index
    %c0_17 = arith.constant 0 : index
    %26 = vector.load %arg8[%c0_16, %c0_17] : memref<32x128xf32, #tpu.memory_space<vmem>>, vector<32x128xf32>
    %cst_18 = arith.constant dense<0.000000e+00> : vector<32x128xf32>
    %27 = tpu.matmul %26, %5, %cst_18 {dimension_numbers = #tpu.dot_dimension_numbers<[1], [0], [0], [1], [0, 0, 1, 1], [], []>} : vector<32x128xf32>, vector<128x128xf32>, vector<32x128xf32> -> vector<32x128xf32>
    %28 = vector.extract_strided_slice %27 {offsets = [0, 0], sizes = [16, 128], strides = [1, 1]} : vector<32x128xf32> to vector<16x128xf32>
    %29 = arith.mulf %25, %28 : vector<16x128xf32>
    %30 = vector.extract_strided_slice %27 {offsets = [16, 0], sizes = [16, 128], strides = [1, 1]} : vector<32x128xf32> to vector<16x128xf32>
    %31 = arith.addf %29, %30 : vector<16x128xf32>
    %cst_19 = arith.constant 0.000000e+00 : f32
    %32 = vector.broadcast %cst_19 : f32 to vector<16x128xf32>
    %33 = arith.maximumf %31, %32 : vector<16x128xf32>
    %c0_20 = arith.constant 0 : index
    %c0_21 = arith.constant 0 : index
    %34 = vector.load %arg9[%c0_20, %c0_21] : memref<1x16xf32, #tpu.memory_space<vmem>>, vector<1x16xf32>
    %cst_22 = arith.constant dense<0.000000e+00> : vector<1x128xf32>
    %35 = tpu.matmul %34, %33, %cst_22 {dimension_numbers = #tpu.dot_dimension_numbers<[1], [0], [0], [1], [0, 0, 1, 1], [], []>} : vector<1x16xf32>, vector<16x128xf32>, vector<1x128xf32> -> vector<1x128xf32>
    %c0_23 = arith.constant 0 : index
    %c0_24 = arith.constant 0 : index
    %36 = vector.load %arg10[%c0_23, %c0_24] : memref<1x1xf32, #tpu.memory_space<vmem>>, vector<1x1xf32>
    %37 = vector.broadcast %36 : vector<1x1xf32> to vector<1x128xf32>
    %38 = arith.addf %35, %37 : vector<1x128xf32>
    %c0_25 = arith.constant 0 : index
    %c0_26 = arith.constant 0 : index
    %39 = vector.load %arg11[%c0_25, %c0_26] : memref<1x128xf32, #tpu.memory_space<vmem>>, vector<1x128xf32>
    tpu.vector_store %arg11[%c0_25, %c0_26], %38 {strides = array<i32>} : memref<1x128xf32, #tpu.memory_space<vmem>>, vector<1x128xf32>,
    return
  }
  func.func @transform_0(%arg0: i32) -> (i32, i32) {
    %c0_i32 = arith.constant 0 : i32
    %c0_i32_0 = arith.constant 0 : i32
    return %c0_i32, %arg0 : i32, i32
  }
  func.func @transform_1(%arg0: i32) -> (i32, i32) {
    %c0_i32 = arith.constant 0 : i32
    %c0_i32_0 = arith.constant 0 : i32
    return %c0_i32, %arg0 : i32, i32
  }
  func.func @transform_2(%arg0: i32) -> (i32, i32) {
    %c0_i32 = arith.constant 0 : i32
    %c0_i32_0 = arith.constant 0 : i32
    %c0_i32_1 = arith.constant 0 : i32
    return %c0_i32, %c0_i32_0 : i32, i32
  }
  func.func @transform_3(%arg0: i32) -> (i32, i32) {
    %c0_i32 = arith.constant 0 : i32
    %c0_i32_0 = arith.constant 0 : i32
    %c0_i32_1 = arith.constant 0 : i32
    return %c0_i32, %c0_i32_0 : i32, i32
  }
  func.func @transform_4(%arg0: i32) -> (i32, i32) {
    %c0_i32 = arith.constant 0 : i32
    %c0_i32_0 = arith.constant 0 : i32
    %c0_i32_1 = arith.constant 0 : i32
    return %c0_i32, %c0_i32_0 : i32, i32
  }
  func.func @transform_5(%arg0: i32) -> (i32, i32) {
    %c0_i32 = arith.constant 0 : i32
    %c0_i32_0 = arith.constant 0 : i32
    %c0_i32_1 = arith.constant 0 : i32
    return %c0_i32, %c0_i32_0 : i32, i32
  }
  func.func @transform_6(%arg0: i32) -> (i32, i32) {
    %c0_i32 = arith.constant 0 : i32
    %c0_i32_0 = arith.constant 0 : i32
    %c0_i32_1 = arith.constant 0 : i32
    return %c0_i32, %c0_i32_0 : i32, i32
  }
  func.func @transform_7(%arg0: i32) -> (i32, i32) {
    %c0_i32 = arith.constant 0 : i32
    %c0_i32_0 = arith.constant 0 : i32
    %c0_i32_1 = arith.constant 0 : i32
    return %c0_i32, %c0_i32_0 : i32, i32
  }
  func.func @transform_8(%arg0: i32) -> (i32, i32) {
    %c0_i32 = arith.constant 0 : i32
    %c0_i32_0 = arith.constant 0 : i32
    %c0_i32_1 = arith.constant 0 : i32
    return %c0_i32, %c0_i32_0 : i32, i32
  }
  func.func @transform_9(%arg0: i32) -> (i32, i32) {
    %c0_i32 = arith.constant 0 : i32
    %c0_i32_0 = arith.constant 0 : i32
    %c0_i32_1 = arith.constant 0 : i32
    return %c0_i32, %c0_i32_0 : i32, i32
  }
  func.func @transform_10(%arg0: i32) -> (i32, i32) {
    %c0_i32 = arith.constant 0 : i32
    %c0_i32_0 = arith.constant 0 : i32
    return %c0_i32, %arg0 : i32, i32
  }
}

</mosaic_0001>

<llo_original>
// kernel: extractor_mlp_forward.3
$region0: #{extractor_mlp_forward.3}
  #allocation0 [shape = 'u32[]', space=smem, size = 0x4, offset = 0x4, fixed_abs, tag = 'smem constant byte address 0x4 - core index']
  #allocation1 [shape = 'u32[144,128]{1,0:T(1,128)}', space=vmem, size = 0x12000, scoped, tag = 'internal scratch']
  %s0 = inlined_call_operand.vmem [shape: bf16[32,128], index: 0, kind: input, shape index: {}]
  %s1 = inlined_call_operand.vmem [shape: s32[1,128], index: 1, kind: input, shape index: {}]
  %s2 = inlined_call_operand.vmem [shape: f32[64,32], index: 2, kind: input, shape index: {}]
  %s3 = inlined_call_operand.vmem [shape: f32[64,1], index: 3, kind: input, shape index: {}]
  %s4 = inlined_call_operand.vmem [shape: f32[1,128,128], index: 4, kind: output, shape index: {}]
  %s5 = sld [smem:[#allocation0]]
  $region26: #{extractor_mlp_forward.3} parent=0
    _
  %s7 = ssub.s32 1, %s5
  %s8 = scalar_select 0, %s7, %s5
  // Predicated region
  $region2: #{extractor_mlp_forward.3} parent=0 // pred_check
    _
  $region3: #{extractor_mlp_forward.3} parent=0 // pred_check_branch
    %10 = sbr.rel (0) target = $region5
  $region4: #{extractor_mlp_forward.3} parent=0 // pred_region
    _
  $region5: #{extractor_mlp_forward.3} parent=0 // pred_fallthru
    _
  // Predicated region
  $region6: #{extractor_mlp_forward.3} parent=0 // pred_check
    _
  $region7: #{extractor_mlp_forward.3} parent=0 // pred_check_branch
    %12 = sbr.rel (0) target = $region9
  $region8: #{extractor_mlp_forward.3} parent=0 // pred_region
    _
  $region9: #{extractor_mlp_forward.3} parent=0 // pred_fallthru
    _
  // Predicated region
  $region10: #{extractor_mlp_forward.3} parent=0 // pred_check
    _
  $region11: #{extractor_mlp_forward.3} parent=0 // pred_check_branch
    %14 = sbr.rel (0) target = $region13
  $region12: #{extractor_mlp_forward.3} parent=0 // pred_region
    _
  $region13: #{extractor_mlp_forward.3} parent=0 // pred_fallthru
    _
  // Predicated region
  $region14: #{extractor_mlp_forward.3} parent=0 // pred_check
    _
  $region15: #{extractor_mlp_forward.3} parent=0 // pred_check_branch
    %16 = sbr.rel (0) target = $region17
  $region16: #{extractor_mlp_forward.3} parent=0 // pred_region
    _
  $region17: #{extractor_mlp_forward.3} parent=0 // pred_fallthru
    _
  %v17 = vld [vmem:[%s1] sm:$0x1]
  %v18 = vlaneseq
  %v19 = vshrl.u32 %v18, 7
  %v20 = vadd.s32 %v19, 8
  %v21 = vadd.s32 %v19, 16
  %v22 = vadd.s32 %v19, 24
  %v23 = vadd.s32 %v19, 32
  %v24 = vadd.s32 %v19, 40
  %v25 = vadd.s32 %v19, 48
  %v26 = vadd.s32 %v19, 56
  %v27 = vadd.s32 %v19, 64
  %v28 = vadd.s32 %v19, 72
  %v29 = vadd.s32 %v19, 80
  %v30 = vadd.s32 %v19, 88
  %v31 = vadd.s32 %v19, 96
  %v32 = vadd.s32 %v19, 104
  %v33 = vadd.s32 %v19, 112
  %v34 = vadd.s32 %v19, 120
  %v35 = vlaneseq
  %v36 = vshrl.u32 %v35, 7
  %v37 = vsub.s32 0, %v36
  %v38 = vrot.slane %v17, %v37
  %vm39 = vcmp.eq.s32.totalorder %v19, %v38
  %vm40 = vcmp.eq.s32.totalorder %v20, %v38
  %vm41 = vcmp.eq.s32.totalorder %v21, %v38
  %vm42 = vcmp.eq.s32.totalorder %v22, %v38
  %vm43 = vcmp.eq.s32.totalorder %v23, %v38
  %vm44 = vcmp.eq.s32.totalorder %v24, %v38
  %vm45 = vcmp.eq.s32.totalorder %v25, %v38
  %vm46 = vcmp.eq.s32.totalorder %v26, %v38
  %vm47 = vcmp.eq.s32.totalorder %v27, %v38
  %vm48 = vcmp.eq.s32.totalorder %v28, %v38
  %vm49 = vcmp.eq.s32.totalorder %v29, %v38
  %vm50 = vcmp.eq.s32.totalorder %v30, %v38
  %vm51 = vcmp.eq.s32.totalorder %v31, %v38
  %vm52 = vcmp.eq.s32.totalorder %v32, %v38
  %vm53 = vcmp.eq.s32.totalorder %v33, %v38
  %vm54 = vcmp.eq.s32.totalorder %v34, %v38
  %v55 = vsel %vm39, 1, 0
  %v56 = vsel %vm40, 1, 0
  %v57 = vsel %vm41, 1, 0
  %v58 = vsel %vm42, 1, 0
  %v59 = vsel %vm43, 1, 0
  %v60 = vsel %vm44, 1, 0
  %v61 = vsel %vm45, 1, 0
  %v62 = vsel %vm46, 1, 0
  %v63 = vsel %vm47, 1, 0
  %v64 = vsel %vm48, 1, 0
  %v65 = vsel %vm49, 1, 0
  %v66 = vsel %vm50, 1, 0
  %v67 = vsel %vm51, 1, 0
  %v68 = vsel %vm52, 1, 0
  %v69 = vsel %vm53, 1, 0
  %v70 = vsel %vm54, 1, 0
  %v71 = vcvt.s32.f32 %v55
  %v72 = vcvt.s32.f32 %v56
  %v73 = vcvt.s32.f32 %v57
  %v74 = vcvt.s32.f32 %v58
  %v75 = vcvt.s32.f32 %v59
  %v76 = vcvt.s32.f32 %v60
  %v77 = vcvt.s32.f32 %v61
  %v78 = vcvt.s32.f32 %v62
  %v79 = vcvt.s32.f32 %v63
  %v80 = vcvt.s32.f32 %v64
  %v81 = vcvt.s32.f32 %v65
  %v82 = vcvt.s32.f32 %v66
  %v83 = vcvt.s32.f32 %v67
  %v84 = vcvt.s32.f32 %v68
  %v85 = vcvt.s32.f32 %v69
  %v86 = vcvt.s32.f32 %v70
  %v87 = vld [vmem:[%s2] sm:$0xff]
  %v88 = vld [vmem:[%s2 + $0x8] sm:$0xff]
  %v89 = vld [vmem:[%s2 + $0x10] sm:$0xff]
  %v90 = vld [vmem:[%s2 + $0x18] sm:$0xff]
  %v91 = vld [vmem:[%s2 + $0x20] sm:$0xff]
  %v92 = vld [vmem:[%s2 + $0x28] sm:$0xff]
  %v93 = vld [vmem:[%s2 + $0x30] sm:$0xff]
  %v94 = vld [vmem:[%s2 + $0x38] sm:$0xff]
  %v95 = vld [vmem:[%s0] sm:$0xf]
  %v96 = vld [vmem:[%s0 + $0x4] sm:$0xf]
  %v97 = vld [vmem:[%s0 + $0x8] sm:$0xf]
  %v98 = vld [vmem:[%s0 + $0xc] sm:$0xf]
  %v99 = vunpack.c.l.bf16 %v95
  %v100 = vunpack.c.l.bf16 %v96
  %v101 = vunpack.c.l.bf16 %v97
  %v102 = vunpack.c.l.bf16 %v98
  %v103 = vld [vmem:[%s3] sm:$0xff]
  %v104 = vld [vmem:[%s3 + $0x8] sm:$0xff]
  %v105 = vld [vmem:[%s3 + $0x10] sm:$0xff]
  %v106 = vld [vmem:[%s3 + $0x18] sm:$0xff]
  %v107 = vld [vmem:[%s3 + $0x20] sm:$0xff]
  %v108 = vld [vmem:[%s3 + $0x28] sm:$0xff]
  %v109 = vld [vmem:[%s3 + $0x30] sm:$0xff]
  %v110 = vld [vmem:[%s3 + $0x38] sm:$0xff]
  %112 = vset.pattern.permute.xlu0 0
  %113 = vperm.xlu0 %112, %v103
  %v114 = vpop.permute.xlu0 %113
  %117 = vset.pattern.permute.xlu0 0
  %118 = vperm.xlu0 %117, %v104
  %v119 = vpop.permute.xlu0 %118
  %122 = vset.pattern.permute.xlu0 0
  %123 = vperm.xlu0 %122, %v105
  %v124 = vpop.permute.xlu0 %123
  %127 = vset.pattern.permute.xlu0 0
  %128 = vperm.xlu0 %127, %v106
  %v129 = vpop.permute.xlu0 %128
  %132 = vset.pattern.permute.xlu0 0
  %133 = vperm.xlu0 %132, %v107
  %v134 = vpop.permute.xlu0 %133
  %137 = vset.pattern.permute.xlu0 0
  %138 = vperm.xlu0 %137, %v108
  %v139 = vpop.permute.xlu0 %138
  %142 = vset.pattern.permute.xlu0 0
  %143 = vperm.xlu0 %142, %v109
  %v144 = vpop.permute.xlu0 %143
  %147 = vset.pattern.permute.xlu0 0
  %148 = vperm.xlu0 %147, %v110
  %v149 = vpop.permute.xlu0 %148
  %vm151 = vcmask 261120
  %v153 = vsel %vm151, %v87, 0
  %v156 = vsel %vm151, %v88, 0
  %v159 = vsel %vm151, %v89, 0
  %v162 = vsel %vm151, %v90, 0
  %v165 = vsel %vm151, %v91, 0
  %v168 = vsel %vm151, %v92, 0
  %v171 = vsel %vm151, %v93, 0
  %v174 = vsel %vm151, %v94, 0
  %176 = vmatprep.subr.mxu0 0.0
  %177 = vmatpush1.msra.mxu0 %v99
  %178 = vmatprep.subr.mxu0 0.0
  %179 = vmatpush1.msra.mxu0 %v100
  %180 = vmatprep.subr.mxu0 0.0
  %181 = vmatpush1.msra.mxu0 %v101
  %182 = vmatprep.subr.mxu0 0.0
  %183 = vmatpush1.msra.mxu0 %v102
  %184 = vmatprep.subr.mxu0 0.0
  %185 = vmatpush1.msra.mxu0 0.0
  %186 = vmatprep.subr.mxu0 0.0
  %187 = vmatpush1.msra.mxu0 0.0
  %188 = vmatprep.subr.mxu0 0.0
  %189 = vmatpush1.msra.mxu0 0.0
  %190 = vmatprep.subr.mxu0 0.0
  %191 = vmatpush1.msra.mxu0 0.0
  %192 = vmatprep.subr.mxu0 0.0
  %193 = vmatpush1.msra.mxu0 0.0
  %194 = vmatprep.subr.mxu0 0.0
  %195 = vmatpush1.msra.mxu0 0.0
  %196 = vmatprep.subr.mxu0 0.0
  %197 = vmatpush1.msra.mxu0 0.0
  %198 = vmatprep.subr.mxu0 0.0
  %199 = vmatpush1.msra.mxu0 0.0
  %200 = vmatprep.subr.mxu0 0.0
  %201 = vmatpush1.msra.mxu0 0.0
  %202 = vmatprep.subr.mxu0 0.0
  %203 = vmatpush1.msra.mxu0 0.0
  %204 = vmatprep.subr.mxu0 0.0
  %205 = vmatpush1.msra.mxu0 0.0
  %206 = vmatprep.subr.mxu0 0.0
  %207 = vmatpush1.msra.mxu0 0.0
  %208 = vmatprep.subr.mxu0 0.0
  %209 = vmatpush1.msra.mxu0 0.0
  %210 = vmatprep.subr.mxu0 0.0
  %211 = vmatpush1.msra.mxu0 0.0
  %212 = vmatprep.subr.mxu0 0.0
  %213 = vmatpush1.msra.mxu0 0.0
  %214 = vmatprep.subr.mxu0 0.0
  %215 = vmatpush1.msra.mxu0 0.0
  %216 = vmatprep.subr.mxu0 0.0
  %217 = vmatpush1.msra.mxu0 0.0
  %218 = vmatprep.subr.mxu0 0.0
  %219 = vmatpush1.msra.mxu0 0.0
  %220 = vmatprep.subr.mxu0 0.0
  %221 = vmatpush1.msra.mxu0 0.0
  %222 = vmatprep.subr.mxu0 0.0
  %223 = vmatpush1.msra.mxu0 0.0
  %224 = vmatprep.subr.mxu0 0.0
  %225 = vmatpush1.msra.mxu0 0.0
  %226 = vmatprep.subr.mxu0 0.0
  %227 = vmatpush1.msra.mxu0 0.0
  %228 = vmatprep.subr.mxu0 0.0
  %229 = vmatpush1.msra.mxu0 0.0
  %230 = vmatprep.subr.mxu0 0.0
  %231 = vmatpush1.msra.mxu0 0.0
  %232 = vmatprep.subr.mxu0 0.0
  %233 = vmatpush1.msra.mxu0 0.0
  %234 = vmatprep.subr.mxu0 0.0
  %235 = vmatpush1.msra.mxu0 0.0
  %236 = vmatprep.subr.mxu0 0.0
  %237 = vmatpush1.msra.mxu0 0.0
  %238 = vmatprep.subr.mxu0 0.0
  %239 = vmatpush1.msra.mxu0 0.0
  %240 = vmatprep.mubr.f32.mxu0 0.0
  %241 = vmatmul.mubr.f32.gmra.mrb[0].mxu0 %v153
  %v242 = vpop.f32.mrb[0].mxu0
  %v243 = vadd.f32 %v114, %v242
  %v244 = vpop.f32.mrb[0].mxu0
  %245 = vmatprep.mubr.f32.mxu0 0.0
  %246 = vmatmul.mubr.f32.gmra.mrb[0].mxu0 %v156
  %v247 = vpop.f32.mrb[0].mxu0
  %v248 = vadd.f32 %v119, %v247
  %v249 = vpop.f32.mrb[0].mxu0
  %250 = vmatprep.mubr.f32.mxu0 0.0
  %251 = vmatmul.mubr.f32.gmra.mrb[0].mxu0 %v159
  %v252 = vpop.f32.mrb[0].mxu0
  %v253 = vadd.f32 %v124, %v252
  %v254 = vpop.f32.mrb[0].mxu0
  %255 = vmatprep.mubr.f32.mxu0 0.0
  %256 = vmatmul.mubr.f32.gmra.mrb[0].mxu0 %v162
  %v257 = vpop.f32.mrb[0].mxu0
  %v258 = vadd.f32 %v129, %v257
  %v259 = vpop.f32.mrb[0].mxu0
  %260 = vmatprep.mubr.f32.mxu0 0.0
  %261 = vmatmul.mubr.f32.gmra.mrb[0].mxu0 %v165
  %v262 = vpop.f32.mrb[0].mxu0
  %v263 = vadd.f32 %v134, %v262
  %v264 = vpop.f32.mrb[0].mxu0
  %265 = vmatprep.mubr.f32.mxu0 0.0
  %266 = vmatmul.mubr.f32.gmra.mrb[0].mxu0 %v168
  %v267 = vpop.f32.mrb[0].mxu0
  %v268 = vadd.f32 %v139, %v267
  %v269 = vpop.f32.mrb[0].mxu0
  %270 = vmatprep.mubr.f32.mxu0 0.0
  %271 = vmatmul.mubr.f32.gmra.mrb[0].mxu0 %v171
  %v272 = vpop.f32.mrb[0].mxu0
  %v273 = vadd.f32 %v144, %v272
  %v274 = vpop.f32.mrb[0].mxu0
  %275 = vmatprep.mubr.f32.mxu0 0.0
  %276 = vmatmul.mubr.f32.gmra.mrb[0].mxu0 %v174
  %v277 = vpop.f32.mrb[0].mxu0
  %v278 = vadd.f32 %v149, %v277
  %v279 = vpop.f32.mrb[0].mxu0
  %280 = vdwg.mxu0
  %281 = vmatprep.subr.mxu0 0.0
  %282 = vmatpush1.xpose.msra.mxu0 %v71
  %283 = vmatprep.subr.mxu0 0.0
  %284 = vmatpush1.xpose.msra.mxu0 %v72
  %285 = vmatprep.subr.mxu0 0.0
  %286 = vmatpush1.xpose.msra.mxu0 %v73
  %287 = vmatprep.subr.mxu0 0.0
  %288 = vmatpush1.xpose.msra.mxu0 %v74
  %289 = vmatprep.subr.mxu0 0.0
  %290 = vmatpush1.xpose.msra.mxu0 %v75
  %291 = vmatprep.subr.mxu0 0.0
  %292 = vmatpush1.xpose.msra.mxu0 %v76
  %293 = vmatprep.subr.mxu0 0.0
  %294 = vmatpush1.xpose.msra.mxu0 %v77
  %295 = vmatprep.subr.mxu0 0.0
  %296 = vmatpush1.xpose.msra.mxu0 %v78
  %297 = vmatprep.subr.mxu0 0.0
  %298 = vmatpush1.xpose.msra.mxu0 %v79
  %299 = vmatprep.subr.mxu0 0.0
  %300 = vmatpush1.xpose.msra.mxu0 %v80
  %301 = vmatprep.subr.mxu0 0.0
  %302 = vmatpush1.xpose.msra.mxu0 %v81
  %303 = vmatprep.subr.mxu0 0.0
  %304 = vmatpush1.xpose.msra.mxu0 %v82
  %305 = vmatprep.subr.mxu0 0.0
  %306 = vmatpush1.xpose.msra.mxu0 %v83
  %307 = vmatprep.subr.mxu0 0.0
  %308 = vmatpush1.xpose.msra.mxu0 %v84
  %309 = vmatprep.subr.mxu0 0.0
  %310 = vmatpush1.xpose.msra.mxu0 %v85
  %311 = vmatprep.subr.mxu0 0.0
  %312 = vmatpush1.xpose.msra.mxu0 %v86
  %313 = vmatprep.subr.mxu0 0.0
  %314 = vmatpush1.xpose.msra.mxu0 0.0
  %315 = vmatprep.subr.mxu0 0.0
  %316 = vmatpush1.xpose.msra.mxu0 0.0
  %317 = vmatprep.subr.mxu0 0.0
  %318 = vmatpush1.xpose.msra.mxu0 0.0
  %319 = vmatprep.subr.mxu0 0.0
  %320 = vmatpush1.xpose.msra.mxu0 0.0
  %321 = vmatprep.subr.mxu0 0.0
  %322 = vmatpush1.xpose.msra.mxu0 0.0
  %323 = vmatprep.subr.mxu0 0.0
  %324 = vmatpush1.xpose.msra.mxu0 0.0
  %325 = vmatprep.subr.mxu0 0.0
  %326 = vmatpush1.xpose.msra.mxu0 0.0
  %327 = vmatprep.subr.mxu0 0.0
  %328 = vmatpush1.xpose.msra.mxu0 0.0
  %329 = vmatprep.subr.mxu0 0.0
  %330 = vmatpush1.xpose.msra.mxu0 0.0
  %331 = vmatprep.subr.mxu0 0.0
  %332 = vmatpush1.xpose.msra.mxu0 0.0
  %333 = vmatprep.subr.mxu0 0.0
  %334 = vmatpush1.xpose.msra.mxu0 0.0
  %335 = vmatprep.subr.mxu0 0.0
  %336 = vmatpush1.xpose.msra.mxu0 0.0
  %337 = vmatprep.subr.mxu0 0.0
  %338 = vmatpush1.xpose.msra.mxu0 0.0
  %339 = vmatprep.subr.mxu0 0.0
  %340 = vmatpush1.xpose.msra.mxu0 0.0
  %341 = vmatprep.subr.mxu0 0.0
  %342 = vmatpush1.xpose.msra.mxu0 0.0
  %343 = vmatprep.subr.mxu0 0.0
  %344 = vmatpush1.xpose.msra.mxu0 0.0
  %345 = vmatprep.mubr.f32.mxu0 0.0
  %346 = vmatmul.mubr.f32.gmra.mrb[0].mxu0 %v243
  %v347 = vpop.f32.mrb[0].mxu0
  %v348 = vadd.f32 0.0, %v347
  %v349 = vpop.f32.mrb[0].mxu0
  %350 = vmatprep.mubr.f32.mxu0 0.0
  %351 = vmatmul.mubr.f32.gmra.mrb[0].mxu0 %v248
  %v352 = vpop.f32.mrb[0].mxu0
  %v353 = vadd.f32 0.0, %v352
  %v354 = vpop.f32.mrb[0].mxu0
  %355 = vmatprep.mubr.f32.mxu0 0.0
  %356 = vmatmul.mubr.f32.gmra.mrb[0].mxu0 %v253
  %v357 = vpop.f32.mrb[0].mxu0
  %v358 = vadd.f32 0.0, %v357
  %v359 = vpop.f32.mrb[0].mxu0
  %360 = vmatprep.mubr.f32.mxu0 0.0
  %361 = vmatmul.mubr.f32.gmra.mrb[0].mxu0 %v258
  %v362 = vpop.f32.mrb[0].mxu0
  %v363 = vadd.f32 0.0, %v362
  %v364 = vpop.f32.mrb[0].mxu0
  %365 = vmatprep.mubr.f32.mxu0 0.0
  %366 = vmatmul.mubr.f32.gmra.mrb[0].mxu0 %v263
  %v367 = vpop.f32.mrb[0].mxu0
  %v368 = vadd.f32 0.0, %v367
  %v369 = vpop.f32.mrb[0].mxu0
  %370 = vmatprep.mubr.f32.mxu0 0.0
  %371 = vmatmul.mubr.f32.gmra.mrb[0].mxu0 %v268
  %v372 = vpop.f32.mrb[0].mxu0
  %v373 = vadd.f32 0.0, %v372
  %v374 = vpop.f32.mrb[0].mxu0
  %375 = vmatprep.mubr.f32.mxu0 0.0
  %376 = vmatmul.mubr.f32.gmra.mrb[0].mxu0 %v273
  %v377 = vpop.f32.mrb[0].mxu0
  %v378 = vadd.f32 0.0, %v377
  %v379 = vpop.f32.mrb[0].mxu0
  %380 = vmatprep.mubr.f32.mxu0 0.0
  %381 = vmatmul.mubr.f32.gmra.mrb[0].mxu0 %v278
  %v382 = vpop.f32.mrb[0].mxu0
  %v383 = vadd.f32 0.0, %v382
  %v384 = vpop.f32.mrb[0].mxu0
  %385 = vdwg.mxu0
  %386 = vst [vmem:[%s4] sm:$0xff] %v348
  %387 = vst [vmem:[%s4 + $0x8] sm:$0xff] %v353
  %388 = vst [vmem:[%s4 + $0x10] sm:$0xff] %v358
  %389 = vst [vmem:[%s4 + $0x18] sm:$0xff] %v363
  %390 = vst [vmem:[%s4 + $0x20] sm:$0xff] %v368
  %391 = vst [vmem:[%s4 + $0x28] sm:$0xff] %v373
  %392 = vst [vmem:[%s4 + $0x30] sm:$0xff] %v378
  %393 = vst [vmem:[%s4 + $0x38] sm:$0xff] %v383
  %v394 = vmul.f32 %v243, %v243
  %v395 = vmul.f32 %v248, %v248
  %v396 = vmul.f32 %v253, %v253
  %v397 = vmul.f32 %v258, %v258
  %v398 = vmul.f32 %v263, %v263
  %v399 = vmul.f32 %v268, %v268
  %v400 = vmul.f32 %v273, %v273
  %v401 = vmul.f32 %v278, %v278
  %402 = vmatprep.subr.mxu0 0.0
  %403 = vmatpush1.xpose.msra.mxu0 %v71
  %404 = vmatprep.subr.mxu0 0.0
  %405 = vmatpush1.xpose.msra.mxu0 %v72
  %406 = vmatprep.subr.mxu0 0.0
  %407 = vmatpush1.xpose.msra.mxu0 %v73
  %408 = vmatprep.subr.mxu0 0.0
  %409 = vmatpush1.xpose.msra.mxu0 %v74
  %410 = vmatprep.subr.mxu0 0.0
  %411 = vmatpush1.xpose.msra.mxu0 %v75
  %412 = vmatprep.subr.mxu0 0.0
  %413 = vmatpush1.xpose.msra.mxu0 %v76
  %414 = vmatprep.subr.mxu0 0.0
  %415 = vmatpush1.xpose.msra.mxu0 %v77
  %416 = vmatprep.subr.mxu0 0.0
  %417 = vmatpush1.xpose.msra.mxu0 %v78
  %418 = vmatprep.subr.mxu0 0.0
  %419 = vmatpush1.xpose.msra.mxu0 %v79
  %420 = vmatprep.subr.mxu0 0.0
  %421 = vmatpush1.xpose.msra.mxu0 %v80
  %422 = vmatprep.subr.mxu0 0.0
  %423 = vmatpush1.xpose.msra.mxu0 %v81
  %424 = vmatprep.subr.mxu0 0.0
  %425 = vmatpush1.xpose.msra.mxu0 %v82
  %426 = vmatprep.subr.mxu0 0.0
  %427 = vmatpush1.xpose.msra.mxu0 %v83
  %428 = vmatprep.subr.mxu0 0.0
  %429 = vmatpush1.xpose.msra.mxu0 %v84
  %430 = vmatprep.subr.mxu0 0.0
  %431 = vmatpush1.xpose.msra.mxu0 %v85
  %432 = vmatprep.subr.mxu0 0.0
  %433 = vmatpush1.xpose.msra.mxu0 %v86
  %434 = vmatprep.subr.mxu0 0.0
  %435 = vmatpush1.xpose.msra.mxu0 0.0
  %436 = vmatprep.subr.mxu0 0.0
  %437 = vmatpush1.xpose.msra.mxu0 0.0
  %438 = vmatprep.subr.mxu0 0.0
  %439 = vmatpush1.xpose.msra.mxu0 0.0
  %440 = vmatprep.subr.mxu0 0.0
  %441 = vmatpush1.xpose.msra.mxu0 0.0
  %442 = vmatprep.subr.mxu0 0.0
  %443 = vmatpush1.xpose.msra.mxu0 0.0
  %444 = vmatprep.subr.mxu0 0.0
  %445 = vmatpush1.xpose.msra.mxu0 0.0
  %446 = vmatprep.subr.mxu0 0.0
  %447 = vmatpush1.xpose.msra.mxu0 0.0
  %448 = vmatprep.subr.mxu0 0.0
  %449 = vmatpush1.xpose.msra.mxu0 0.0
  %450 = vmatprep.subr.mxu0 0.0
  %451 = vmatpush1.xpose.msra.mxu0 0.0
  %452 = vmatprep.subr.mxu0 0.0
  %453 = vmatpush1.xpose.msra.mxu0 0.0
  %454 = vmatprep.subr.mxu0 0.0
  %455 = vmatpush1.xpose.msra.mxu0 0.0
  %456 = vmatprep.subr.mxu0 0.0
  %457 = vmatpush1.xpose.msra.mxu0 0.0
  %458 = vmatprep.subr.mxu0 0.0
  %459 = vmatpush1.xpose.msra.mxu0 0.0
  %460 = vmatprep.subr.mxu0 0.0
  %461 = vmatpush1.xpose.msra.mxu0 0.0
  %462 = vmatprep.subr.mxu0 0.0
  %463 = vmatpush1.xpose.msra.mxu0 0.0
  %464 = vmatprep.subr.mxu0 0.0
  %465 = vmatpush1.xpose.msra.mxu0 0.0
  %466 = vmatprep.mubr.f32.mxu0 0.0
  %467 = vmatmul.mubr.f32.gmra.mrb[0].mxu0 %v394
  %v468 = vpop.f32.mrb[0].mxu0
  %v469 = vadd.f32 0.0, %v468
  %v470 = vpop.f32.mrb[0].mxu0
  %471 = vmatprep.mubr.f32.mxu0 0.0
  %472 = vmatmul.mubr.f32.gmra.mrb[0].mxu0 %v395
  %v473 = vpop.f32.mrb[0].mxu0
  %v474 = vadd.f32 0.0, %v473
  %v475 = vpop.f32.mrb[0].mxu0
  %476 = vmatprep.mubr.f32.mxu0 0.0
  %477 = vmatmul.mubr.f32.gmra.mrb[0].mxu0 %v396
  %v478 = vpop.f32.mrb[0].mxu0
  %v479 = vadd.f32 0.0, %v478
  %v480 = vpop.f32.mrb[0].mxu0
  %481 = vmatprep.mubr.f32.mxu0 0.0
  %482 = vmatmul.mubr.f32.gmra.mrb[0].mxu0 %v397
  %v483 = vpop.f32.mrb[0].mxu0
  %v484 = vadd.f32 0.0, %v483
  %v485 = vpop.f32.mrb[0].mxu0
  %486 = vmatprep.mubr.f32.mxu0 0.0
  %487 = vmatmul.mubr.f32.gmra.mrb[0].mxu0 %v398
  %v488 = vpop.f32.mrb[0].mxu0
  %v489 = vadd.f32 0.0, %v488
  %v490 = vpop.f32.mrb[0].mxu0
  %491 = vmatprep.mubr.f32.mxu0 0.0
  %492 = vmatmul.mubr.f32.gmra.mrb[0].mxu0 %v399
  %v493 = vpop.f32.mrb[0].mxu0
  %v494 = vadd.f32 0.0, %v493
  %v495 = vpop.f32.mrb[0].mxu0
  %496 = vmatprep.mubr.f32.mxu0 0.0
  %497 = vmatmul.mubr.f32.gmra.mrb[0].mxu0 %v400
  %v498 = vpop.f32.mrb[0].mxu0
  %v499 = vadd.f32 0.0, %v498
  %v500 = vpop.f32.mrb[0].mxu0
  %501 = vmatprep.mubr.f32.mxu0 0.0
  %502 = vmatmul.mubr.f32.gmra.mrb[0].mxu0 %v401
  %v503 = vpop.f32.mrb[0].mxu0
  %v504 = vadd.f32 0.0, %v503
  %v505 = vpop.f32.mrb[0].mxu0
  %506 = vdwg.mxu0
  %507 = vst [vmem:[%s4 + $0x40] sm:$0xff] %v469
  %508 = vst [vmem:[%s4 + $0x48] sm:$0xff] %v474
  %509 = vst [vmem:[%s4 + $0x50] sm:$0xff] %v479
  %510 = vst [vmem:[%s4 + $0x58] sm:$0xff] %v484
  %511 = vst [vmem:[%s4 + $0x60] sm:$0xff] %v489
  %512 = vst [vmem:[%s4 + $0x68] sm:$0xff] %v494
  %513 = vst [vmem:[%s4 + $0x70] sm:$0xff] %v499
  %514 = vst [vmem:[%s4 + $0x78] sm:$0xff] %v504
  // Predicated region
  $region18: #{extractor_mlp_forward.3} parent=0 // pred_check
    _
  $region19: #{extractor_mlp_forward.3} parent=0 // pred_check_branch
    %516 = sbr.rel (0) target = $region21
  $region20: #{extractor_mlp_forward.3} parent=0 // pred_region
    _
  $region21: #{extractor_mlp_forward.3} parent=0 // pred_fallthru
    _
  // Predicated region
  $region22: #{extractor_mlp_forward.3} parent=0 // pred_check
    _
  $region23: #{extractor_mlp_forward.3} parent=0 // pred_check_branch
    %518 = sbr.rel (0) target = $region25
  $region24: #{extractor_mlp_forward.3} parent=0 // pred_region
    _
  $region25: #{extractor_mlp_forward.3} parent=0 // pred_fallthru
    _

// kernel: extractor_mlp_forward.4
$region0: #{extractor_mlp_forward.4}
  #allocation0 [shape = 'u32[]', space=smem, size = 0x4, offset = 0x4, fixed_abs, tag = 'smem constant byte address 0x4 - core index']
  #allocation1 [shape = 'u32[144,128]{1,0:T(1,128)}', space=vmem, size = 0x12000, scoped, tag = 'internal scratch']
  %s0 = inlined_call_operand.vmem [shape: bf16[32,128], index: 0, kind: input, shape index: {}]
  %s1 = inlined_call_operand.vmem [shape: s32[1,128], index: 1, kind: input, shape index: {}]
  %s2 = inlined_call_operand.vmem [shape: f32[64,32], index: 2, kind: input, shape index: {}]
  %s3 = inlined_call_operand.vmem [shape: f32[64,1], index: 3, kind: input, shape index: {}]
  %s4 = inlined_call_operand.vmem [shape: f32[128,128], index: 4, kind: input, shape index: {}]
  %s5 = inlined_call_operand.vmem [shape: f32[16,64], index: 5, kind: input, shape index: {}]
  %s6 = inlined_call_operand.vmem [shape: f32[16,1], index: 6, kind: input, shape index: {}]
  %s7 = inlined_call_operand.vmem [shape: f32[1,32,128], index: 7, kind: output, shape index: {}]
  %s8 = sld [smem:[#allocation0]]
  $region38: #{extractor_mlp_forward.4} parent=0
    _
  %s10 = ssub.s32 1, %s8
  %s11 = scalar_select 0, %s10, %s8
  // Predicated region
  $region2: #{extractor_mlp_forward.4} parent=0 // pred_check
    _
  $region3: #{extractor_mlp_forward.4} parent=0 // pred_check_branch
    %13 = sbr.rel (0) target = $region5
  $region4: #{extractor_mlp_forward.4} parent=0 // pred_region
    _
  $region5: #{extractor_mlp_forward.4} parent=0 // pred_fallthru
    _
  // Predicated region
  $region6: #{extractor_mlp_forward.4} parent=0 // pred_check
    _
  $region7: #{extractor_mlp_forward.4} parent=0 // pred_check_branch
    %15 = sbr.rel (0) target = $region9
  $region8: #{extractor_mlp_forward.4} parent=0 // pred_region
    _
  $region9: #{extractor_mlp_forward.4} parent=0 // pred_fallthru
    _
  // Predicated region
  $region10: #{extractor_mlp_forward.4} parent=0 // pred_check
    _
  $region11: #{extractor_mlp_forward.4} parent=0 // pred_check_branch
    %17 = sbr.rel (0) target = $region13
  $region12: #{extractor_mlp_forward.4} parent=0 // pred_region
    _
  $region13: #{extractor_mlp_forward.4} parent=0 // pred_fallthru
    _
  // Predicated region
  $region14: #{extractor_mlp_forward.4} parent=0 // pred_check
    _
  $region15: #{extractor_mlp_forward.4} parent=0 // pred_check_branch
    %19 = sbr.rel (0) target = $region17
  $region16: #{extractor_mlp_forward.4} parent=0 // pred_region
    _
  $region17: #{extractor_mlp_forward.4} parent=0 // pred_fallthru
    _
  // Predicated region
  $region18: #{extractor_mlp_forward.4} parent=0 // pred_check
    _
  $region19: #{extractor_mlp_forward.4} parent=0 // pred_check_branch
    %21 = sbr.rel (0) target = $region21
  $region20: #{extractor_mlp_forward.4} parent=0 // pred_region
    _
  $region21: #{extractor_mlp_forward.4} parent=0 // pred_fallthru
    _
  // Predicated region
  $region22: #{extractor_mlp_forward.4} parent=0 // pred_check
    _
  $region23: #{extractor_mlp_forward.4} parent=0 // pred_check_branch
    %23 = sbr.rel (0) target = $region25
  $region24: #{extractor_mlp_forward.4} parent=0 // pred_region
    _
  $region25: #{extractor_mlp_forward.4} parent=0 // pred_fallthru
    _
  // Predicated region
  $region26: #{extractor_mlp_forward.4} parent=0 // pred_check
    _
  $region27: #{extractor_mlp_forward.4} parent=0 // pred_check_branch
    %25 = sbr.rel (0) target = $region29
  $region28: #{extractor_mlp_forward.4} parent=0 // pred_region
    _
  $region29: #{extractor_mlp_forward.4} parent=0 // pred_fallthru
    _
  %v26 = vld [vmem:[%s1] sm:$0x1]
  %v27 = vlaneseq
  %v28 = vshrl.u32 %v27, 7
  %v29 = vadd.s32 %v28, 8
  %v30 = vadd.s32 %v28, 16
  %v31 = vadd.s32 %v28, 24
  %v32 = vadd.s32 %v28, 32
  %v33 = vadd.s32 %v28, 40
  %v34 = vadd.s32 %v28, 48
  %v35 = vadd.s32 %v28, 56
  %v36 = vadd.s32 %v28, 64
  %v37 = vadd.s32 %v28, 72
  %v38 = vadd.s32 %v28, 80
  %v39 = vadd.s32 %v28, 88
  %v40 = vadd.s32 %v28, 96
  %v41 = vadd.s32 %v28, 104
  %v42 = vadd.s32 %v28, 112
  %v43 = vadd.s32 %v28, 120
  %v44 = vlaneseq
  %v45 = vshrl.u32 %v44, 7
  %v46 = vsub.s32 0, %v45
  %v47 = vrot.slane %v26, %v46
  %vm48 = vcmp.eq.s32.totalorder %v28, %v47
  %vm49 = vcmp.eq.s32.totalorder %v29, %v47
  %vm50 = vcmp.eq.s32.totalorder %v30, %v47
  %vm51 = vcmp.eq.s32.totalorder %v31, %v47
  %vm52 = vcmp.eq.s32.totalorder %v32, %v47
  %vm53 = vcmp.eq.s32.totalorder %v33, %v47
  %vm54 = vcmp.eq.s32.totalorder %v34, %v47
  %vm55 = vcmp.eq.s32.totalorder %v35, %v47
  %vm56 = vcmp.eq.s32.totalorder %v36, %v47
  %vm57 = vcmp.eq.s32.totalorder %v37, %v47
  %vm58 = vcmp.eq.s32.totalorder %v38, %v47
  %vm59 = vcmp.eq.s32.totalorder %v39, %v47
  %vm60 = vcmp.eq.s32.totalorder %v40, %v47
  %vm61 = vcmp.eq.s32.totalorder %v41, %v47
  %vm62 = vcmp.eq.s32.totalorder %v42, %v47
  %vm63 = vcmp.eq.s32.totalorder %v43, %v47
  %v64 = vsel %vm48, 1, 0
  %v65 = vsel %vm49, 1, 0
  %v66 = vsel %vm50, 1, 0
  %v67 = vsel %vm51, 1, 0
  %v68 = vsel %vm52, 1, 0
  %v69 = vsel %vm53, 1, 0
  %v70 = vsel %vm54, 1, 0
  %v71 = vsel %vm55, 1, 0
  %v72 = vsel %vm56, 1, 0
  %v73 = vsel %vm57, 1, 0
  %v74 = vsel %vm58, 1, 0
  %v75 = vsel %vm59, 1, 0
  %v76 = vsel %vm60, 1, 0
  %v77 = vsel %vm61, 1, 0
  %v78 = vsel %vm62, 1, 0
  %v79 = vsel %vm63, 1, 0
  %v80 = vcvt.s32.f32 %v64
  %v81 = vcvt.s32.f32 %v65
  %v82 = vcvt.s32.f32 %v66
  %v83 = vcvt.s32.f32 %v67
  %v84 = vcvt.s32.f32 %v68
  %v85 = vcvt.s32.f32 %v69
  %v86 = vcvt.s32.f32 %v70
  %v87 = vcvt.s32.f32 %v71
  %v88 = vcvt.s32.f32 %v72
  %v89 = vcvt.s32.f32 %v73
  %v90 = vcvt.s32.f32 %v74
  %v91 = vcvt.s32.f32 %v75
  %v92 = vcvt.s32.f32 %v76
  %v93 = vcvt.s32.f32 %v77
  %v94 = vcvt.s32.f32 %v78
  %v95 = vcvt.s32.f32 %v79
  %v96 = vld [vmem:[%s2] sm:$0xff]
  %v97 = vld [vmem:[%s2 + $0x8] sm:$0xff]
  %v98 = vld [vmem:[%s2 + $0x10] sm:$0xff]
  %v99 = vld [vmem:[%s2 + $0x18] sm:$0xff]
  %v100 = vld [vmem:[%s2 + $0x20] sm:$0xff]
  %v101 = vld [vmem:[%s2 + $0x28] sm:$0xff]
  %v102 = vld [vmem:[%s2 + $0x30] sm:$0xff]
  %v103 = vld [vmem:[%s2 + $0x38] sm:$0xff]
  %v104 = vld [vmem:[%s0] sm:$0xf]
  %v105 = vld [vmem:[%s0 + $0x4] sm:$0xf]
  %v106 = vld [vmem:[%s0 + $0x8] sm:$0xf]
  %v107 = vld [vmem:[%s0 + $0xc] sm:$0xf]
  %v108 = vunpack.c.l.bf16 %v104
  %v109 = vunpack.c.l.bf16 %v105
  %v110 = vunpack.c.l.bf16 %v106
  %v111 = vunpack.c.l.bf16 %v107
  %v112 = vld [vmem:[%s3] sm:$0xff]
  %v113 = vld [vmem:[%s3 + $0x8] sm:$0xff]
  %v114 = vld [vmem:[%s3 + $0x10] sm:$0xff]
  %v115 = vld [vmem:[%s3 + $0x18] sm:$0xff]
  %v116 = vld [vmem:[%s3 + $0x20] sm:$0xff]
  %v117 = vld [vmem:[%s3 + $0x28] sm:$0xff]
  %v118 = vld [vmem:[%s3 + $0x30] sm:$0xff]
  %v119 = vld [vmem:[%s3 + $0x38] sm:$0xff]
  %121 = vset.pattern.permute.xlu0 0
  %122 = vperm.xlu0 %121, %v112
  %v123 = vpop.permute.xlu0 %122
  %126 = vset.pattern.permute.xlu0 0
  %127 = vperm.xlu0 %126, %v113
  %v128 = vpop.permute.xlu0 %127
  %131 = vset.pattern.permute.xlu0 0
  %132 = vperm.xlu0 %131, %v114
  %v133 = vpop.permute.xlu0 %132
  %136 = vset.pattern.permute.xlu0 0
  %137 = vperm.xlu0 %136, %v115
  %v138 = vpop.permute.xlu0 %137
  %141 = vset.pattern.permute.xlu0 0
  %142 = vperm.xlu0 %141, %v116
  %v143 = vpop.permute.xlu0 %142
  %146 = vset.pattern.permute.xlu0 0
  %147 = vperm.xlu0 %146, %v117
  %v148 = vpop.permute.xlu0 %147
  %151 = vset.pattern.permute.xlu0 0
  %152 = vperm.xlu0 %151, %v118
  %v153 = vpop.permute.xlu0 %152
  %156 = vset.pattern.permute.xlu0 0
  %157 = vperm.xlu0 %156, %v119
  %v158 = vpop.permute.xlu0 %157
  %vm160 = vcmask 261120
  %v162 = vsel %vm160, %v96, 0
  %v165 = vsel %vm160, %v97, 0
  %v168 = vsel %vm160, %v98, 0
  %v171 = vsel %vm160, %v99, 0
  %v174 = vsel %vm160, %v100, 0
  %v177 = vsel %vm160, %v101, 0
  %v180 = vsel %vm160, %v102, 0
  %v183 = vsel %vm160, %v103, 0
  %185 = vmatprep.subr.mxu0 0.0
  %186 = vmatpush1.msra.mxu0 %v108
  %187 = vmatprep.subr.mxu0 0.0
  %188 = vmatpush1.msra.mxu0 %v109
  %189 = vmatprep.subr.mxu0 0.0
  %190 = vmatpush1.msra.mxu0 %v110
  %191 = vmatprep.subr.mxu0 0.0
  %192 = vmatpush1.msra.mxu0 %v111
  %193 = vmatprep.subr.mxu0 0.0
  %194 = vmatpush1.msra.mxu0 0.0
  %195 = vmatprep.subr.mxu0 0.0
  %196 = vmatpush1.msra.mxu0 0.0
  %197 = vmatprep.subr.mxu0 0.0
  %198 = vmatpush1.msra.mxu0 0.0
  %199 = vmatprep.subr.mxu0 0.0
  %200 = vmatpush1.msra.mxu0 0.0
  %201 = vmatprep.subr.mxu0 0.0
  %202 = vmatpush1.msra.mxu0 0.0
  %203 = vmatprep.subr.mxu0 0.0
  %204 = vmatpush1.msra.mxu0 0.0
  %205 = vmatprep.subr.mxu0 0.0
  %206 = vmatpush1.msra.mxu0 0.0
  %207 = vmatprep.subr.mxu0 0.0
  %208 = vmatpush1.msra.mxu0 0.0
  %209 = vmatprep.subr.mxu0 0.0
  %210 = vmatpush1.msra.mxu0 0.0
  %211 = vmatprep.subr.mxu0 0.0
  %212 = vmatpush1.msra.mxu0 0.0
  %213 = vmatprep.subr.mxu0 0.0
  %214 = vmatpush1.msra.mxu0 0.0
  %215 = vmatprep.subr.mxu0 0.0
  %216 = vmatpush1.msra.mxu0 0.0
  %217 = vmatprep.subr.mxu0 0.0
  %218 = vmatpush1.msra.mxu0 0.0
  %219 = vmatprep.subr.mxu0 0.0
  %220 = vmatpush1.msra.mxu0 0.0
  %221 = vmatprep.subr.mxu0 0.0
  %222 = vmatpush1.msra.mxu0 0.0
  %223 = vmatprep.subr.mxu0 0.0
  %224 = vmatpush1.msra.mxu0 0.0
  %225 = vmatprep.subr.mxu0 0.0
  %226 = vmatpush1.msra.mxu0 0.0
  %227 = vmatprep.subr.mxu0 0.0
  %228 = vmatpush1.msra.mxu0 0.0
  %229 = vmatprep.subr.mxu0 0.0
  %230 = vmatpush1.msra.mxu0 0.0
  %231 = vmatprep.subr.mxu0 0.0
  %232 = vmatpush1.msra.mxu0 0.0
  %233 = vmatprep.subr.mxu0 0.0
  %234 = vmatpush1.msra.mxu0 0.0
  %235 = vmatprep.subr.mxu0 0.0
  %236 = vmatpush1.msra.mxu0 0.0
  %237 = vmatprep.subr.mxu0 0.0
  %238 = vmatpush1.msra.mxu0 0.0
  %239 = vmatprep.subr.mxu0 0.0
  %240 = vmatpush1.msra.mxu0 0.0
  %241 = vmatprep.subr.mxu0 0.0
  %242 = vmatpush1.msra.mxu0 0.0
  %243 = vmatprep.subr.mxu0 0.0
  %244 = vmatpush1.msra.mxu0 0.0
  %245 = vmatprep.subr.mxu0 0.0
  %246 = vmatpush1.msra.mxu0 0.0
  %247 = vmatprep.subr.mxu0 0.0
  %248 = vmatpush1.msra.mxu0 0.0
  %249 = vmatprep.mubr.f32.mxu0 0.0
  %250 = vmatmul.mubr.f32.gmra.mrb[0].mxu0 %v162
  %v251 = vpop.f32.mrb[0].mxu0
  %v252 = vadd.f32 %v123, %v251
  %v253 = vpop.f32.mrb[0].mxu0
  %254 = vmatprep.mubr.f32.mxu0 0.0
  %255 = vmatmul.mubr.f32.gmra.mrb[0].mxu0 %v165
  %v256 = vpop.f32.mrb[0].mxu0
  %v257 = vadd.f32 %v128, %v256
  %v258 = vpop.f32.mrb[0].mxu0
  %259 = vmatprep.mubr.f32.mxu0 0.0
  %260 = vmatmul.mubr.f32.gmra.mrb[0].mxu0 %v168
  %v261 = vpop.f32.mrb[0].mxu0
  %v262 = vadd.f32 %v133, %v261
  %v263 = vpop.f32.mrb[0].mxu0
  %264 = vmatprep.mubr.f32.mxu0 0.0
  %265 = vmatmul.mubr.f32.gmra.mrb[0].mxu0 %v171
  %v266 = vpop.f32.mrb[0].mxu0
  %v267 = vadd.f32 %v138, %v266
  %v268 = vpop.f32.mrb[0].mxu0
  %269 = vmatprep.mubr.f32.mxu0 0.0
  %270 = vmatmul.mubr.f32.gmra.mrb[0].mxu0 %v174
  %v271 = vpop.f32.mrb[0].mxu0
  %v272 = vadd.f32 %v143, %v271
  %v273 = vpop.f32.mrb[0].mxu0
  %274 = vmatprep.mubr.f32.mxu0 0.0
  %275 = vmatmul.mubr.f32.gmra.mrb[0].mxu0 %v177
  %v276 = vpop.f32.mrb[0].mxu0
  %v277 = vadd.f32 %v148, %v276
  %v278 = vpop.f32.mrb[0].mxu0
  %279 = vmatprep.mubr.f32.mxu0 0.0
  %280 = vmatmul.mubr.f32.gmra.mrb[0].mxu0 %v180
  %v281 = vpop.f32.mrb[0].mxu0
  %v282 = vadd.f32 %v153, %v281
  %v283 = vpop.f32.mrb[0].mxu0
  %284 = vmatprep.mubr.f32.mxu0 0.0
  %285 = vmatmul.mubr.f32.gmra.mrb[0].mxu0 %v183
  %v286 = vpop.f32.mrb[0].mxu0
  %v287 = vadd.f32 %v158, %v286
  %v288 = vpop.f32.mrb[0].mxu0
  %289 = vdwg.mxu0
  %v290 = vld [vmem:[%s4] sm:$0xff]
  %v291 = vld [vmem:[%s4 + $0x8] sm:$0xff]
  %v292 = vld [vmem:[%s4 + $0x10] sm:$0xff]
  %v293 = vld [vmem:[%s4 + $0x18] sm:$0xff]
  %v294 = vld [vmem:[%s4 + $0x20] sm:$0xff]
  %v295 = vld [vmem:[%s4 + $0x28] sm:$0xff]
  %v296 = vld [vmem:[%s4 + $0x30] sm:$0xff]
  %v297 = vld [vmem:[%s4 + $0x38] sm:$0xff]
  %v298 = vld [vmem:[%s4 + $0x40] sm:$0xff]
  %v299 = vld [vmem:[%s4 + $0x48] sm:$0xff]
  %v300 = vld [vmem:[%s4 + $0x50] sm:$0xff]
  %v301 = vld [vmem:[%s4 + $0x58] sm:$0xff]
  %v302 = vld [vmem:[%s4 + $0x60] sm:$0xff]
  %v303 = vld [vmem:[%s4 + $0x68] sm:$0xff]
  %v304 = vld [vmem:[%s4 + $0x70] sm:$0xff]
  %v305 = vld [vmem:[%s4 + $0x78] sm:$0xff]
  %306 = vmatprep.subr.mxu0 0.0
  %307 = vmatpush1.msra.mxu0 %v80
  %308 = vmatprep.subr.mxu0 0.0
  %309 = vmatpush1.msra.mxu0 %v81
  %310 = vmatprep.subr.mxu0 0.0
  %311 = vmatpush1.msra.mxu0 %v82
  %312 = vmatprep.subr.mxu0 0.0
  %313 = vmatpush1.msra.mxu0 %v83
  %314 = vmatprep.subr.mxu0 0.0
  %315 = vmatpush1.msra.mxu0 %v84
  %316 = vmatprep.subr.mxu0 0.0
  %317 = vmatpush1.msra.mxu0 %v85
  %318 = vmatprep.subr.mxu0 0.0
  %319 = vmatpush1.msra.mxu0 %v86
  %320 = vmatprep.subr.mxu0 0.0
  %321 = vmatpush1.msra.mxu0 %v87
  %322 = vmatprep.subr.mxu0 0.0
  %323 = vmatpush1.msra.mxu0 %v88
  %324 = vmatprep.subr.mxu0 0.0
  %325 = vmatpush1.msra.mxu0 %v89
  %326 = vmatprep.subr.mxu0 0.0
  %327 = vmatpush1.msra.mxu0 %v90
  %328 = vmatprep.subr.mxu0 0.0
  %329 = vmatpush1.msra.mxu0 %v91
  %330 = vmatprep.subr.mxu0 0.0
  %331 = vmatpush1.msra.mxu0 %v92
  %332 = vmatprep.subr.mxu0 0.0
  %333 = vmatpush1.msra.mxu0 %v93
  %334 = vmatprep.subr.mxu0 0.0
  %335 = vmatpush1.msra.mxu0 %v94
  %336 = vmatprep.subr.mxu0 0.0
  %337 = vmatpush1.msra.mxu0 %v95
  %338 = vmatprep.subr.mxu0 0.0
  %339 = vmatpush1.msra.mxu0 0.0
  %340 = vmatprep.subr.mxu0 0.0
  %341 = vmatpush1.msra.mxu0 0.0
  %342 = vmatprep.subr.mxu0 0.0
  %343 = vmatpush1.msra.mxu0 0.0
  %344 = vmatprep.subr.mxu0 0.0
  %345 = vmatpush1.msra.mxu0 0.0
  %346 = vmatprep.subr.mxu0 0.0
  %347 = vmatpush1.msra.mxu0 0.0
  %348 = vmatprep.subr.mxu0 0.0
  %349 = vmatpush1.msra.mxu0 0.0
  %350 = vmatprep.subr.mxu0 0.0
  %351 = vmatpush1.msra.mxu0 0.0
  %352 = vmatprep.subr.mxu0 0.0
  %353 = vmatpush1.msra.mxu0 0.0
  %354 = vmatprep.subr.mxu0 0.0
  %355 = vmatpush1.msra.mxu0 0.0
  %356 = vmatprep.subr.mxu0 0.0
  %357 = vmatpush1.msra.mxu0 0.0
  %358 = vmatprep.subr.mxu0 0.0
  %359 = vmatpush1.msra.mxu0 0.0
  %360 = vmatprep.subr.mxu0 0.0
  %361 = vmatpush1.msra.mxu0 0.0
  %362 = vmatprep.subr.mxu0 0.0
  %363 = vmatpush1.msra.mxu0 0.0
  %364 = vmatprep.subr.mxu0 0.0
  %365 = vmatpush1.msra.mxu0 0.0
  %366 = vmatprep.subr.mxu0 0.0
  %367 = vmatpush1.msra.mxu0 0.0
  %368 = vmatprep.subr.mxu0 0.0
  %369 = vmatpush1.msra.mxu0 0.0
  %370 = vmatprep.mubr.f32.mxu0 0.0
  %371 = vmatmul.mubr.f32.gmra.mrb[0].mxu0 %v290
  %v372 = vpop.f32.mrb[0].mxu0
  %v373 = vadd.f32 0.0, %v372
  %v374 = vpop.f32.mrb[0].mxu0
  %375 = vmatprep.mubr.f32.mxu0 0.0
  %376 = vmatmul.mubr.f32.gmra.mrb[0].mxu0 %v291
  %v377 = vpop.f32.mrb[0].mxu0
  %v378 = vadd.f32 0.0, %v377
  %v379 = vpop.f32.mrb[0].mxu0
  %380 = vmatprep.mubr.f32.mxu0 0.0
  %381 = vmatmul.mubr.f32.gmra.mrb[0].mxu0 %v292
  %v382 = vpop.f32.mrb[0].mxu0
  %v383 = vadd.f32 0.0, %v382
  %v384 = vpop.f32.mrb[0].mxu0
  %385 = vmatprep.mubr.f32.mxu0 0.0
  %386 = vmatmul.mubr.f32.gmra.mrb[0].mxu0 %v293
  %v387 = vpop.f32.mrb[0].mxu0
  %v388 = vadd.f32 0.0, %v387
  %v389 = vpop.f32.mrb[0].mxu0
  %390 = vmatprep.mubr.f32.mxu0 0.0
  %391 = vmatmul.mubr.f32.gmra.mrb[0].mxu0 %v294
  %v392 = vpop.f32.mrb[0].mxu0
  %v393 = vadd.f32 0.0, %v392
  %v394 = vpop.f32.mrb[0].mxu0
  %395 = vmatprep.mubr.f32.mxu0 0.0
  %396 = vmatmul.mubr.f32.gmra.mrb[0].mxu0 %v295
  %v397 = vpop.f32.mrb[0].mxu0
  %v398 = vadd.f32 0.0, %v397
  %v399 = vpop.f32.mrb[0].mxu0
  %400 = vmatprep.mubr.f32.mxu0 0.0
  %401 = vmatmul.mubr.f32.gmra.mrb[0].mxu0 %v296
  %v402 = vpop.f32.mrb[0].mxu0
  %v403 = vadd.f32 0.0, %v402
  %v404 = vpop.f32.mrb[0].mxu0
  %405 = vmatprep.mubr.f32.mxu0 0.0
  %406 = vmatmul.mubr.f32.gmra.mrb[0].mxu0 %v297
  %v407 = vpop.f32.mrb[0].mxu0
  %v408 = vadd.f32 0.0, %v407
  %v409 = vpop.f32.mrb[0].mxu0
  %410 = vmatprep.mubr.f32.mxu0 0.0
  %411 = vmatmul.mubr.f32.gmra.mrb[0].mxu0 %v298
  %v412 = vpop.f32.mrb[0].mxu0
  %v413 = vadd.f32 0.0, %v412
  %v414 = vpop.f32.mrb[0].mxu0
  %415 = vmatprep.mubr.f32.mxu0 0.0
  %416 = vmatmul.mubr.f32.gmra.mrb[0].mxu0 %v299
  %v417 = vpop.f32.mrb[0].mxu0
  %v418 = vadd.f32 0.0, %v417
  %v419 = vpop.f32.mrb[0].mxu0
  %420 = vmatprep.mubr.f32.mxu0 0.0
  %421 = vmatmul.mubr.f32.gmra.mrb[0].mxu0 %v300
  %v422 = vpop.f32.mrb[0].mxu0
  %v423 = vadd.f32 0.0, %v422
  %v424 = vpop.f32.mrb[0].mxu0
  %425 = vmatprep.mubr.f32.mxu0 0.0
  %426 = vmatmul.mubr.f32.gmra.mrb[0].mxu0 %v301
  %v427 = vpop.f32.mrb[0].mxu0
  %v428 = vadd.f32 0.0, %v427
  %v429 = vpop.f32.mrb[0].mxu0
  %430 = vmatprep.mubr.f32.mxu0 0.0
  %431 = vmatmul.mubr.f32.gmra.mrb[0].mxu0 %v302
  %v432 = vpop.f32.mrb[0].mxu0
  %v433 = vadd.f32 0.0, %v432
  %v434 = vpop.f32.mrb[0].mxu0
  %435 = vmatprep.mubr.f32.mxu0 0.0
  %436 = vmatmul.mubr.f32.gmra.mrb[0].mxu0 %v303
  %v437 = vpop.f32.mrb[0].mxu0
  %v438 = vadd.f32 0.0, %v437
  %v439 = vpop.f32.mrb[0].mxu0
  %440 = vmatprep.mubr.f32.mxu0 0.0
  %441 = vmatmul.mubr.f32.gmra.mrb[0].mxu0 %v304
  %v442 = vpop.f32.mrb[0].mxu0
  %v443 = vadd.f32 0.0, %v442
  %v444 = vpop.f32.mrb[0].mxu0
  %445 = vmatprep.mubr.f32.mxu0 0.0
  %446 = vmatmul.mubr.f32.gmra.mrb[0].mxu0 %v305
  %v447 = vpop.f32.mrb[0].mxu0
  %v448 = vadd.f32 0.0, %v447
  %v449 = vpop.f32.mrb[0].mxu0
  %450 = vdwg.mxu0
  %v451 = vmul.f32 %v252, %v373
  %v452 = vmul.f32 %v257, %v378
  %v453 = vmul.f32 %v262, %v383
  %v454 = vmul.f32 %v267, %v388
  %v455 = vmul.f32 %v272, %v393
  %v456 = vmul.f32 %v277, %v398
  %v457 = vmul.f32 %v282, %v403
  %v458 = vmul.f32 %v287, %v408
  %v459 = vadd.f32 %v451, %v413
  %v460 = vadd.f32 %v452, %v418
  %v461 = vadd.f32 %v453, %v423
  %v462 = vadd.f32 %v454, %v428
  %v463 = vadd.f32 %v455, %v433
  %v464 = vadd.f32 %v456, %v438
  %v465 = vadd.f32 %v457, %v443
  %v466 = vadd.f32 %v458, %v448
  %v467 = vmax.f32 %v459, 0.0
  %v468 = vmax.f32 %v460, 0.0
  %v469 = vmax.f32 %v461, 0.0
  %v470 = vmax.f32 %v462, 0.0
  %v471 = vmax.f32 %v463, 0.0
  %v472 = vmax.f32 %v464, 0.0
  %v473 = vmax.f32 %v465, 0.0
  %v474 = vmax.f32 %v466, 0.0
  %v475 = vld [vmem:[%s5] sm:$0xff]
  %v476 = vld [vmem:[%s5 + $0x8] sm:$0xff]
  %v477 = vld [vmem:[%s6] sm:$0xff]
  %v478 = vld [vmem:[%s6 + $0x8] sm:$0xff]
  %480 = vset.pattern.permute.xlu0 0
  %481 = vperm.xlu0 %480, %v477
  %v482 = vpop.permute.xlu0 %481
  %485 = vset.pattern.permute.xlu0 0
  %486 = vperm.xlu0 %485, %v478
  %v487 = vpop.permute.xlu0 %486
  %vm489 = vcmask 523264
  %v491 = vsel %vm489, %v475, 0
  %v494 = vsel %vm489, %v476, 0
  %496 = vmatprep.subr.mxu0 0.0
  %497 = vmatpush1.msra.mxu0 %v467
  %498 = vmatprep.subr.mxu0 0.0
  %499 = vmatpush1.msra.mxu0 %v468
  %500 = vmatprep.subr.mxu0 0.0
  %501 = vmatpush1.msra.mxu0 %v469
  %502 = vmatprep.subr.mxu0 0.0
  %503 = vmatpush1.msra.mxu0 %v470
  %504 = vmatprep.subr.mxu0 0.0
  %505 = vmatpush1.msra.mxu0 %v471
  %506 = vmatprep.subr.mxu0 0.0
  %507 = vmatpush1.msra.mxu0 %v472
  %508 = vmatprep.subr.mxu0 0.0
  %509 = vmatpush1.msra.mxu0 %v473
  %510 = vmatprep.subr.mxu0 0.0
  %511 = vmatpush1.msra.mxu0 %v474
  %512 = vmatprep.subr.mxu0 0.0
  %513 = vmatpush1.msra.mxu0 0.0
  %514 = vmatprep.subr.mxu0 0.0
  %515 = vmatpush1.msra.mxu0 0.0
  %516 = vmatprep.subr.mxu0 0.0
  %517 = vmatpush1.msra.mxu0 0.0
  %518 = vmatprep.subr.mxu0 0.0
  %519 = vmatpush1.msra.mxu0 0.0
  %520 = vmatprep.subr.mxu0 0.0
  %521 = vmatpush1.msra.mxu0 0.0
  %522 = vmatprep.subr.mxu0 0.0
  %523 = vmatpush1.msra.mxu0 0.0
  %524 = vmatprep.subr.mxu0 0.0
  %525 = vmatpush1.msra.mxu0 0.0
  %526 = vmatprep.subr.mxu0 0.0
  %527 = vmatpush1.msra.mxu0 0.0
  %528 = vmatprep.subr.mxu0 0.0
  %529 = vmatpush1.msra.mxu0 0.0
  %530 = vmatprep.subr.mxu0 0.0
  %531 = vmatpush1.msra.mxu0 0.0
  %532 = vmatprep.subr.mxu0 0.0
  %533 = vmatpush1.msra.mxu0 0.0
  %534 = vmatprep.subr.mxu0 0.0
  %535 = vmatpush1.msra.mxu0 0.0
  %536 = vmatprep.subr.mxu0 0.0
  %537 = vmatpush1.msra.mxu0 0.0
  %538 = vmatprep.subr.mxu0 0.0
  %539 = vmatpush1.msra.mxu0 0.0
  %540 = vmatprep.subr.mxu0 0.0
  %541 = vmatpush1.msra.mxu0 0.0
  %542 = vmatprep.subr.mxu0 0.0
  %543 = vmatpush1.msra.mxu0 0.0
  %544 = vmatprep.subr.mxu0 0.0
  %545 = vmatpush1.msra.mxu0 0.0
  %546 = vmatprep.subr.mxu0 0.0
  %547 = vmatpush1.msra.mxu0 0.0
  %548 = vmatprep.subr.mxu0 0.0
  %549 = vmatpush1.msra.mxu0 0.0
  %550 = vmatprep.subr.mxu0 0.0
  %551 = vmatpush1.msra.mxu0 0.0
  %552 = vmatprep.subr.mxu0 0.0
  %553 = vmatpush1.msra.mxu0 0.0
  %554 = vmatprep.subr.mxu0 0.0
  %555 = vmatpush1.msra.mxu0 0.0
  %556 = vmatprep.subr.mxu0 0.0
  %557 = vmatpush1.msra.mxu0 0.0
  %558 = vmatprep.subr.mxu0 0.0
  %559 = vmatpush1.msra.mxu0 0.0
  %560 = vmatprep.mubr.f32.mxu0 0.0
  %561 = vmatmul.mubr.f32.gmra.mrb[0].mxu0 %v491
  %v562 = vpop.f32.mrb[0].mxu0
  %v563 = vadd.f32 %v482, %v562
  %v564 = vpop.f32.mrb[0].mxu0
  %565 = vmatprep.mubr.f32.mxu0 0.0
  %566 = vmatmul.mubr.f32.gmra.mrb[0].mxu0 %v494
  %v567 = vpop.f32.mrb[0].mxu0
  %v568 = vadd.f32 %v487, %v567
  %v569 = vpop.f32.mrb[0].mxu0
  %570 = vdwg.mxu0
  %571 = vmatprep.subr.mxu0 0.0
  %572 = vmatpush1.xpose.msra.mxu0 %v80
  %573 = vmatprep.subr.mxu0 0.0
  %574 = vmatpush1.xpose.msra.mxu0 %v81
  %575 = vmatprep.subr.mxu0 0.0
  %576 = vmatpush1.xpose.msra.mxu0 %v82
  %577 = vmatprep.subr.mxu0 0.0
  %578 = vmatpush1.xpose.msra.mxu0 %v83
  %579 = vmatprep.subr.mxu0 0.0
  %580 = vmatpush1.xpose.msra.mxu0 %v84
  %581 = vmatprep.subr.mxu0 0.0
  %582 = vmatpush1.xpose.msra.mxu0 %v85
  %583 = vmatprep.subr.mxu0 0.0
  %584 = vmatpush1.xpose.msra.mxu0 %v86
  %585 = vmatprep.subr.mxu0 0.0
  %586 = vmatpush1.xpose.msra.mxu0 %v87
  %587 = vmatprep.subr.mxu0 0.0
  %588 = vmatpush1.xpose.msra.mxu0 %v88
  %589 = vmatprep.subr.mxu0 0.0
  %590 = vmatpush1.xpose.msra.mxu0 %v89
  %591 = vmatprep.subr.mxu0 0.0
  %592 = vmatpush1.xpose.msra.mxu0 %v90
  %593 = vmatprep.subr.mxu0 0.0
  %594 = vmatpush1.xpose.msra.mxu0 %v91
  %595 = vmatprep.subr.mxu0 0.0
  %596 = vmatpush1.xpose.msra.mxu0 %v92
  %597 = vmatprep.subr.mxu0 0.0
  %598 = vmatpush1.xpose.msra.mxu0 %v93
  %599 = vmatprep.subr.mxu0 0.0
  %600 = vmatpush1.xpose.msra.mxu0 %v94
  %601 = vmatprep.subr.mxu0 0.0
  %602 = vmatpush1.xpose.msra.mxu0 %v95
  %603 = vmatprep.subr.mxu0 0.0
  %604 = vmatpush1.xpose.msra.mxu0 0.0
  %605 = vmatprep.subr.mxu0 0.0
  %606 = vmatpush1.xpose.msra.mxu0 0.0
  %607 = vmatprep.subr.mxu0 0.0
  %608 = vmatpush1.xpose.msra.mxu0 0.0
  %609 = vmatprep.subr.mxu0 0.0
  %610 = vmatpush1.xpose.msra.mxu0 0.0
  %611 = vmatprep.subr.mxu0 0.0
  %612 = vmatpush1.xpose.msra.mxu0 0.0
  %613 = vmatprep.subr.mxu0 0.0
  %614 = vmatpush1.xpose.msra.mxu0 0.0
  %615 = vmatprep.subr.mxu0 0.0
  %616 = vmatpush1.xpose.msra.mxu0 0.0
  %617 = vmatprep.subr.mxu0 0.0
  %618 = vmatpush1.xpose.msra.mxu0 0.0
  %619 = vmatprep.subr.mxu0 0.0
  %620 = vmatpush1.xpose.msra.mxu0 0.0
  %621 = vmatprep.subr.mxu0 0.0
  %622 = vmatpush1.xpose.msra.mxu0 0.0
  %623 = vmatprep.subr.mxu0 0.0
  %624 = vmatpush1.xpose.msra.mxu0 0.0
  %625 = vmatprep.subr.mxu0 0.0
  %626 = vmatpush1.xpose.msra.mxu0 0.0
  %627 = vmatprep.subr.mxu0 0.0
  %628 = vmatpush1.xpose.msra.mxu0 0.0
  %629 = vmatprep.subr.mxu0 0.0
  %630 = vmatpush1.xpose.msra.mxu0 0.0
  %631 = vmatprep.subr.mxu0 0.0
  %632 = vmatpush1.xpose.msra.mxu0 0.0
  %633 = vmatprep.subr.mxu0 0.0
  %634 = vmatpush1.xpose.msra.mxu0 0.0
  %635 = vmatprep.mubr.f32.mxu0 0.0
  %636 = vmatmul.mubr.f32.gmra.mrb[0].mxu0 %v563
  %v637 = vpop.f32.mrb[0].mxu0
  %v638 = vadd.f32 0.0, %v637
  %v639 = vpop.f32.mrb[0].mxu0
  %640 = vmatprep.mubr.f32.mxu0 0.0
  %641 = vmatmul.mubr.f32.gmra.mrb[0].mxu0 %v568
  %v642 = vpop.f32.mrb[0].mxu0
  %v643 = vadd.f32 0.0, %v642
  %v644 = vpop.f32.mrb[0].mxu0
  %645 = vdwg.mxu0
  %646 = vst [vmem:[%s7] sm:$0xff] %v638
  %647 = vst [vmem:[%s7 + $0x8] sm:$0xff] %v643
  %v648 = vmul.f32 %v563, %v563
  %v649 = vmul.f32 %v568, %v568
  %650 = vmatprep.subr.mxu0 0.0
  %651 = vmatpush1.xpose.msra.mxu0 %v80
  %652 = vmatprep.subr.mxu0 0.0
  %653 = vmatpush1.xpose.msra.mxu0 %v81
  %654 = vmatprep.subr.mxu0 0.0
  %655 = vmatpush1.xpose.msra.mxu0 %v82
  %656 = vmatprep.subr.mxu0 0.0
  %657 = vmatpush1.xpose.msra.mxu0 %v83
  %658 = vmatprep.subr.mxu0 0.0
  %659 = vmatpush1.xpose.msra.mxu0 %v84
  %660 = vmatprep.subr.mxu0 0.0
  %661 = vmatpush1.xpose.msra.mxu0 %v85
  %662 = vmatprep.subr.mxu0 0.0
  %663 = vmatpush1.xpose.msra.mxu0 %v86
  %664 = vmatprep.subr.mxu0 0.0
  %665 = vmatpush1.xpose.msra.mxu0 %v87
  %666 = vmatprep.subr.mxu0 0.0
  %667 = vmatpush1.xpose.msra.mxu0 %v88
  %668 = vmatprep.subr.mxu0 0.0
  %669 = vmatpush1.xpose.msra.mxu0 %v89
  %670 = vmatprep.subr.mxu0 0.0
  %671 = vmatpush1.xpose.msra.mxu0 %v90
  %672 = vmatprep.subr.mxu0 0.0
  %673 = vmatpush1.xpose.msra.mxu0 %v91
  %674 = vmatprep.subr.mxu0 0.0
  %675 = vmatpush1.xpose.msra.mxu0 %v92
  %676 = vmatprep.subr.mxu0 0.0
  %677 = vmatpush1.xpose.msra.mxu0 %v93
  %678 = vmatprep.subr.mxu0 0.0
  %679 = vmatpush1.xpose.msra.mxu0 %v94
  %680 = vmatprep.subr.mxu0 0.0
  %681 = vmatpush1.xpose.msra.mxu0 %v95
  %682 = vmatprep.subr.mxu0 0.0
  %683 = vmatpush1.xpose.msra.mxu0 0.0
  %684 = vmatprep.subr.mxu0 0.0
  %685 = vmatpush1.xpose.msra.mxu0 0.0
  %686 = vmatprep.subr.mxu0 0.0
  %687 = vmatpush1.xpose.msra.mxu0 0.0
  %688 = vmatprep.subr.mxu0 0.0
  %689 = vmatpush1.xpose.msra.mxu0 0.0
  %690 = vmatprep.subr.mxu0 0.0
  %691 = vmatpush1.xpose.msra.mxu0 0.0
  %692 = vmatprep.subr.mxu0 0.0
  %693 = vmatpush1.xpose.msra.mxu0 0.0
  %694 = vmatprep.subr.mxu0 0.0
  %695 = vmatpush1.xpose.msra.mxu0 0.0
  %696 = vmatprep.subr.mxu0 0.0
  %697 = vmatpush1.xpose.msra.mxu0 0.0
  %698 = vmatprep.subr.mxu0 0.0
  %699 = vmatpush1.xpose.msra.mxu0 0.0
  %700 = vmatprep.subr.mxu0 0.0
  %701 = vmatpush1.xpose.msra.mxu0 0.0
  %702 = vmatprep.subr.mxu0 0.0
  %703 = vmatpush1.xpose.msra.mxu0 0.0
  %704 = vmatprep.subr.mxu0 0.0
  %705 = vmatpush1.xpose.msra.mxu0 0.0
  %706 = vmatprep.subr.mxu0 0.0
  %707 = vmatpush1.xpose.msra.mxu0 0.0
  %708 = vmatprep.subr.mxu0 0.0
  %709 = vmatpush1.xpose.msra.mxu0 0.0
  %710 = vmatprep.subr.mxu0 0.0
  %711 = vmatpush1.xpose.msra.mxu0 0.0
  %712 = vmatprep.subr.mxu0 0.0
  %713 = vmatpush1.xpose.msra.mxu0 0.0
  %714 = vmatprep.mubr.f32.mxu0 0.0
  %715 = vmatmul.mubr.f32.gmra.mrb[0].mxu0 %v648
  %v716 = vpop.f32.mrb[0].mxu0
  %v717 = vadd.f32 0.0, %v716
  %v718 = vpop.f32.mrb[0].mxu0
  %719 = vmatprep.mubr.f32.mxu0 0.0
  %720 = vmatmul.mubr.f32.gmra.mrb[0].mxu0 %v649
  %v721 = vpop.f32.mrb[0].mxu0
  %v722 = vadd.f32 0.0, %v721
  %v723 = vpop.f32.mrb[0].mxu0
  %724 = vdwg.mxu0
  %725 = vst [vmem:[%s7 + $0x10] sm:$0xff] %v717
  %726 = vst [vmem:[%s7 + $0x18] sm:$0xff] %v722
  // Predicated region
  $region30: #{extractor_mlp_forward.4} parent=0 // pred_check
    _
  $region31: #{extractor_mlp_forward.4} parent=0 // pred_check_branch
    %728 = sbr.rel (0) target = $region33
  $region32: #{extractor_mlp_forward.4} parent=0 // pred_region
    _
  $region33: #{extractor_mlp_forward.4} parent=0 // pred_fallthru
    _
  // Predicated region
  $region34: #{extractor_mlp_forward.4} parent=0 // pred_check
    _
  $region35: #{extractor_mlp_forward.4} parent=0 // pred_check_branch
    %730 = sbr.rel (0) target = $region37
  $region36: #{extractor_mlp_forward.4} parent=0 // pred_region
    _
  $region37: #{extractor_mlp_forward.4} parent=0 // pred_fallthru
    _

// kernel: extractor_mlp_forward.5
$region0: #{extractor_mlp_forward.5}
  #allocation0 [shape = 'u32[]', space=smem, size = 0x4, offset = 0x4, fixed_abs, tag = 'smem constant byte address 0x4 - core index']
  #allocation1 [shape = 'u32[144,128]{1,0:T(1,128)}', space=vmem, size = 0x12000, scoped, tag = 'internal scratch']
  #allocation2 [shape = 'f32[1,1]{1,0:T(1,128)S(1)}', space=vmem, size = 0x200, scoped, tag = 'scoped memory for extractor_mlp_forward.5']
  %s0 = inlined_call_operand.vmem [shape: bf16[32,128], index: 0, kind: input, shape index: {}]
  %s1 = inlined_call_operand.vmem [shape: s32[1,128], index: 1, kind: input, shape index: {}]
  %s2 = inlined_call_operand.vmem [shape: f32[64,32], index: 2, kind: input, shape index: {}]
  %s3 = inlined_call_operand.vmem [shape: f32[64,1], index: 3, kind: input, shape index: {}]
  %s4 = inlined_call_operand.vmem [shape: f32[128,128], index: 4, kind: input, shape index: {}]
  %s5 = inlined_call_operand.vmem [shape: f32[16,64], index: 5, kind: input, shape index: {}]
  %s6 = inlined_call_operand.vmem [shape: f32[16,1], index: 6, kind: input, shape index: {}]
  %s7 = inlined_call_operand.vmem [shape: f32[32,128], index: 7, kind: input, shape index: {}]
  %s8 = inlined_call_operand.vmem [shape: f32[1,16], index: 8, kind: input, shape index: {}]
  %s9 = inlined_call_operand.<no memory space> [shape: f32[1,1], index: 9, kind: input, shape index: {}]
  %s10 = inlined_call_operand.vmem [shape: f32[1,128], index: 10, kind: output, shape index: {}]
  %s11 = sld [smem:[#allocation0]]
  $region50: #{extractor_mlp_forward.5} parent=0
    _
  %s13 = ssub.s32 1, %s11
  %s14 = scalar_select 0, %s13, %s11
  %v15 = vstv %s9
  %16 = vst [vmem:[#allocation2] sm:$0x1] %v15
  // Predicated region
  $region2: #{extractor_mlp_forward.5} parent=0 // pred_check
    _
  $region3: #{extractor_mlp_forward.5} parent=0 // pred_check_branch
    %18 = sbr.rel (0) target = $region5
  $region4: #{extractor_mlp_forward.5} parent=0 // pred_region
    _
  $region5: #{extractor_mlp_forward.5} parent=0 // pred_fallthru
    _
  // Predicated region
  $region6: #{extractor_mlp_forward.5} parent=0 // pred_check
    _
  $region7: #{extractor_mlp_forward.5} parent=0 // pred_check_branch
    %20 = sbr.rel (0) target = $region9
  $region8: #{extractor_mlp_forward.5} parent=0 // pred_region
    _
  $region9: #{extractor_mlp_forward.5} parent=0 // pred_fallthru
    _
  // Predicated region
  $region10: #{extractor_mlp_forward.5} parent=0 // pred_check
    _
  $region11: #{extractor_mlp_forward.5} parent=0 // pred_check_branch
    %22 = sbr.rel (0) target = $region13
  $region12: #{extractor_mlp_forward.5} parent=0 // pred_region
    _
  $region13: #{extractor_mlp_forward.5} parent=0 // pred_fallthru
    _
  // Predicated region
  $region14: #{extractor_mlp_forward.5} parent=0 // pred_check
    _
  $region15: #{extractor_mlp_forward.5} parent=0 // pred_check_branch
    %24 = sbr.rel (0) target = $region17
  $region16: #{extractor_mlp_forward.5} parent=0 // pred_region
    _
  $region17: #{extractor_mlp_forward.5} parent=0 // pred_fallthru
    _
  // Predicated region
  $region18: #{extractor_mlp_forward.5} parent=0 // pred_check
    _
  $region19: #{extractor_mlp_forward.5} parent=0 // pred_check_branch
    %26 = sbr.rel (0) target = $region21
  $region20: #{extractor_mlp_forward.5} parent=0 // pred_region
    _
  $region21: #{extractor_mlp_forward.5} parent=0 // pred_fallthru
    _
  // Predicated region
  $region22: #{extractor_mlp_forward.5} parent=0 // pred_check
    _
  $region23: #{extractor_mlp_forward.5} parent=0 // pred_check_branch
    %28 = sbr.rel (0) target = $region25
  $region24: #{extractor_mlp_forward.5} parent=0 // pred_region
    _
  $region25: #{extractor_mlp_forward.5} parent=0 // pred_fallthru
    _
  // Predicated region
  $region26: #{extractor_mlp_forward.5} parent=0 // pred_check
    _
  $region27: #{extractor_mlp_forward.5} parent=0 // pred_check_branch
    %30 = sbr.rel (0) target = $region29
  $region28: #{extractor_mlp_forward.5} parent=0 // pred_region
    _
  $region29: #{extractor_mlp_forward.5} parent=0 // pred_fallthru
    _
  // Predicated region
  $region30: #{extractor_mlp_forward.5} parent=0 // pred_check
    _
  $region31: #{extractor_mlp_forward.5} parent=0 // pred_check_branch
    %32 = sbr.rel (0) target = $region33
  $region32: #{extractor_mlp_forward.5} parent=0 // pred_region
    _
  $region33: #{extractor_mlp_forward.5} parent=0 // pred_fallthru
    _
  // Predicated region
  $region34: #{extractor_mlp_forward.5} parent=0 // pred_check
    _
  $region35: #{extractor_mlp_forward.5} parent=0 // pred_check_branch
    %34 = sbr.rel (0) target = $region37
  $region36: #{extractor_mlp_forward.5} parent=0 // pred_region
    _
  $region37: #{extractor_mlp_forward.5} parent=0 // pred_fallthru
    _
  // Predicated region
  $region38: #{extractor_mlp_forward.5} parent=0 // pred_check
    _
  $region39: #{extractor_mlp_forward.5} parent=0 // pred_check_branch
    %36 = sbr.rel (0) target = $region41
  $region40: #{extractor_mlp_forward.5} parent=0 // pred_region
    _
  $region41: #{extractor_mlp_forward.5} parent=0 // pred_fallthru
    _
  %v37 = vld [vmem:[%s1] sm:$0x1]
  %v38 = vlaneseq
  %v39 = vshrl.u32 %v38, 7
  %v40 = vadd.s32 %v39, 8
  %v41 = vadd.s32 %v39, 16
  %v42 = vadd.s32 %v39, 24
  %v43 = vadd.s32 %v39, 32
  %v44 = vadd.s32 %v39, 40
  %v45 = vadd.s32 %v39, 48
  %v46 = vadd.s32 %v39, 56
  %v47 = vadd.s32 %v39, 64
  %v48 = vadd.s32 %v39, 72
  %v49 = vadd.s32 %v39, 80
  %v50 = vadd.s32 %v39, 88
  %v51 = vadd.s32 %v39, 96
  %v52 = vadd.s32 %v39, 104
  %v53 = vadd.s32 %v39, 112
  %v54 = vadd.s32 %v39, 120
  %v55 = vlaneseq
  %v56 = vshrl.u32 %v55, 7
  %v57 = vsub.s32 0, %v56
  %v58 = vrot.slane %v37, %v57
  %vm59 = vcmp.eq.s32.totalorder %v39, %v58
  %vm60 = vcmp.eq.s32.totalorder %v40, %v58
  %vm61 = vcmp.eq.s32.totalorder %v41, %v58
  %vm62 = vcmp.eq.s32.totalorder %v42, %v58
  %vm63 = vcmp.eq.s32.totalorder %v43, %v58
  %vm64 = vcmp.eq.s32.totalorder %v44, %v58
  %vm65 = vcmp.eq.s32.totalorder %v45, %v58
  %vm66 = vcmp.eq.s32.totalorder %v46, %v58
  %vm67 = vcmp.eq.s32.totalorder %v47, %v58
  %vm68 = vcmp.eq.s32.totalorder %v48, %v58
  %vm69 = vcmp.eq.s32.totalorder %v49, %v58
  %vm70 = vcmp.eq.s32.totalorder %v50, %v58
  %vm71 = vcmp.eq.s32.totalorder %v51, %v58
  %vm72 = vcmp.eq.s32.totalorder %v52, %v58
  %vm73 = vcmp.eq.s32.totalorder %v53, %v58
  %vm74 = vcmp.eq.s32.totalorder %v54, %v58
  %v75 = vsel %vm59, 1, 0
  %v76 = vsel %vm60, 1, 0
  %v77 = vsel %vm61, 1, 0
  %v78 = vsel %vm62, 1, 0
  %v79 = vsel %vm63, 1, 0
  %v80 = vsel %vm64, 1, 0
  %v81 = vsel %vm65, 1, 0
  %v82 = vsel %vm66, 1, 0
  %v83 = vsel %vm67, 1, 0
  %v84 = vsel %vm68, 1, 0
  %v85 = vsel %vm69, 1, 0
  %v86 = vsel %vm70, 1, 0
  %v87 = vsel %vm71, 1, 0
  %v88 = vsel %vm72, 1, 0
  %v89 = vsel %vm73, 1, 0
  %v90 = vsel %vm74, 1, 0
  %v91 = vcvt.s32.f32 %v75
  %v92 = vcvt.s32.f32 %v76
  %v93 = vcvt.s32.f32 %v77
  %v94 = vcvt.s32.f32 %v78
  %v95 = vcvt.s32.f32 %v79
  %v96 = vcvt.s32.f32 %v80
  %v97 = vcvt.s32.f32 %v81
  %v98 = vcvt.s32.f32 %v82
  %v99 = vcvt.s32.f32 %v83
  %v100 = vcvt.s32.f32 %v84
  %v101 = vcvt.s32.f32 %v85
  %v102 = vcvt.s32.f32 %v86
  %v103 = vcvt.s32.f32 %v87
  %v104 = vcvt.s32.f32 %v88
  %v105 = vcvt.s32.f32 %v89
  %v106 = vcvt.s32.f32 %v90
  %v107 = vld [vmem:[%s2] sm:$0xff]
  %v108 = vld [vmem:[%s2 + $0x8] sm:$0xff]
  %v109 = vld [vmem:[%s2 + $0x10] sm:$0xff]
  %v110 = vld [vmem:[%s2 + $0x18] sm:$0xff]
  %v111 = vld [vmem:[%s2 + $0x20] sm:$0xff]
  %v112 = vld [vmem:[%s2 + $0x28] sm:$0xff]
  %v113 = vld [vmem:[%s2 + $0x30] sm:$0xff]
  %v114 = vld [vmem:[%s2 + $0x38] sm:$0xff]
  %v115 = vld [vmem:[%s0] sm:$0xf]
  %v116 = vld [vmem:[%s0 + $0x4] sm:$0xf]
  %v117 = vld [vmem:[%s0 + $0x8] sm:$0xf]
  %v118 = vld [vmem:[%s0 + $0xc] sm:$0xf]
  %v119 = vunpack.c.l.bf16 %v115
  %v120 = vunpack.c.l.bf16 %v116
  %v121 = vunpack.c.l.bf16 %v117
  %v122 = vunpack.c.l.bf16 %v118
  %v123 = vld [vmem:[%s3] sm:$0xff]
  %v124 = vld [vmem:[%s3 + $0x8] sm:$0xff]
  %v125 = vld [vmem:[%s3 + $0x10] sm:$0xff]
  %v126 = vld [vmem:[%s3 + $0x18] sm:$0xff]
  %v127 = vld [vmem:[%s3 + $0x20] sm:$0xff]
  %v128 = vld [vmem:[%s3 + $0x28] sm:$0xff]
  %v129 = vld [vmem:[%s3 + $0x30] sm:$0xff]
  %v130 = vld [vmem:[%s3 + $0x38] sm:$0xff]
  %132 = vset.pattern.permute.xlu0 0
  %133 = vperm.xlu0 %132, %v123
  %v134 = vpop.permute.xlu0 %133
  %137 = vset.pattern.permute.xlu0 0
  %138 = vperm.xlu0 %137, %v124
  %v139 = vpop.permute.xlu0 %138
  %142 = vset.pattern.permute.xlu0 0
  %143 = vperm.xlu0 %142, %v125
  %v144 = vpop.permute.xlu0 %143
  %147 = vset.pattern.permute.xlu0 0
  %148 = vperm.xlu0 %147, %v126
  %v149 = vpop.permute.xlu0 %148
  %152 = vset.pattern.permute.xlu0 0
  %153 = vperm.xlu0 %152, %v127
  %v154 = vpop.permute.xlu0 %153
  %157 = vset.pattern.permute.xlu0 0
  %158 = vperm.xlu0 %157, %v128
  %v159 = vpop.permute.xlu0 %158
  %162 = vset.pattern.permute.xlu0 0
  %163 = vperm.xlu0 %162, %v129
  %v164 = vpop.permute.xlu0 %163
  %167 = vset.pattern.permute.xlu0 0
  %168 = vperm.xlu0 %167, %v130
  %v169 = vpop.permute.xlu0 %168
  %vm171 = vcmask 261120
  %v173 = vsel %vm171, %v107, 0
  %v176 = vsel %vm171, %v108, 0
  %v179 = vsel %vm171, %v109, 0
  %v182 = vsel %vm171, %v110, 0
  %v185 = vsel %vm171, %v111, 0
  %v188 = vsel %vm171, %v112, 0
  %v191 = vsel %vm171, %v113, 0
  %v194 = vsel %vm171, %v114, 0
  %196 = vmatprep.subr.mxu0 0.0
  %197 = vmatpush1.msra.mxu0 %v119
  %198 = vmatprep.subr.mxu0 0.0
  %199 = vmatpush1.msra.mxu0 %v120
  %200 = vmatprep.subr.mxu0 0.0
  %201 = vmatpush1.msra.mxu0 %v121
  %202 = vmatprep.subr.mxu0 0.0
  %203 = vmatpush1.msra.mxu0 %v122
  %204 = vmatprep.subr.mxu0 0.0
  %205 = vmatpush1.msra.mxu0 0.0
  %206 = vmatprep.subr.mxu0 0.0
  %207 = vmatpush1.msra.mxu0 0.0
  %208 = vmatprep.subr.mxu0 0.0
  %209 = vmatpush1.msra.mxu0 0.0
  %210 = vmatprep.subr.mxu0 0.0
  %211 = vmatpush1.msra.mxu0 0.0
  %212 = vmatprep.subr.mxu0 0.0
  %213 = vmatpush1.msra.mxu0 0.0
  %214 = vmatprep.subr.mxu0 0.0
  %215 = vmatpush1.msra.mxu0 0.0
  %216 = vmatprep.subr.mxu0 0.0
  %217 = vmatpush1.msra.mxu0 0.0
  %218 = vmatprep.subr.mxu0 0.0
  %219 = vmatpush1.msra.mxu0 0.0
  %220 = vmatprep.subr.mxu0 0.0
  %221 = vmatpush1.msra.mxu0 0.0
  %222 = vmatprep.subr.mxu0 0.0
  %223 = vmatpush1.msra.mxu0 0.0
  %224 = vmatprep.subr.mxu0 0.0
  %225 = vmatpush1.msra.mxu0 0.0
  %226 = vmatprep.subr.mxu0 0.0
  %227 = vmatpush1.msra.mxu0 0.0
  %228 = vmatprep.subr.mxu0 0.0
  %229 = vmatpush1.msra.mxu0 0.0
  %230 = vmatprep.subr.mxu0 0.0
  %231 = vmatpush1.msra.mxu0 0.0
  %232 = vmatprep.subr.mxu0 0.0
  %233 = vmatpush1.msra.mxu0 0.0
  %234 = vmatprep.subr.mxu0 0.0
  %235 = vmatpush1.msra.mxu0 0.0
  %236 = vmatprep.subr.mxu0 0.0
  %237 = vmatpush1.msra.mxu0 0.0
  %238 = vmatprep.subr.mxu0 0.0
  %239 = vmatpush1.msra.mxu0 0.0
  %240 = vmatprep.subr.mxu0 0.0
  %241 = vmatpush1.msra.mxu0 0.0
  %242 = vmatprep.subr.mxu0 0.0
  %243 = vmatpush1.msra.mxu0 0.0
  %244 = vmatprep.subr.mxu0 0.0
  %245 = vmatpush1.msra.mxu0 0.0
  %246 = vmatprep.subr.mxu0 0.0
  %247 = vmatpush1.msra.mxu0 0.0
  %248 = vmatprep.subr.mxu0 0.0
  %249 = vmatpush1.msra.mxu0 0.0
  %250 = vmatprep.subr.mxu0 0.0
  %251 = vmatpush1.msra.mxu0 0.0
  %252 = vmatprep.subr.mxu0 0.0
  %253 = vmatpush1.msra.mxu0 0.0
  %254 = vmatprep.subr.mxu0 0.0
  %255 = vmatpush1.msra.mxu0 0.0
  %256 = vmatprep.subr.mxu0 0.0
  %257 = vmatpush1.msra.mxu0 0.0
  %258 = vmatprep.subr.mxu0 0.0
  %259 = vmatpush1.msra.mxu0 0.0
  %260 = vmatprep.mubr.f32.mxu0 0.0
  %261 = vmatmul.mubr.f32.gmra.mrb[0].mxu0 %v173
  %v262 = vpop.f32.mrb[0].mxu0
  %v263 = vadd.f32 %v134, %v262
  %v264 = vpop.f32.mrb[0].mxu0
  %265 = vmatprep.mubr.f32.mxu0 0.0
  %266 = vmatmul.mubr.f32.gmra.mrb[0].mxu0 %v176
  %v267 = vpop.f32.mrb[0].mxu0
  %v268 = vadd.f32 %v139, %v267
  %v269 = vpop.f32.mrb[0].mxu0
  %270 = vmatprep.mubr.f32.mxu0 0.0
  %271 = vmatmul.mubr.f32.gmra.mrb[0].mxu0 %v179
  %v272 = vpop.f32.mrb[0].mxu0
  %v273 = vadd.f32 %v144, %v272
  %v274 = vpop.f32.mrb[0].mxu0
  %275 = vmatprep.mubr.f32.mxu0 0.0
  %276 = vmatmul.mubr.f32.gmra.mrb[0].mxu0 %v182
  %v277 = vpop.f32.mrb[0].mxu0
  %v278 = vadd.f32 %v149, %v277
  %v279 = vpop.f32.mrb[0].mxu0
  %280 = vmatprep.mubr.f32.mxu0 0.0
  %281 = vmatmul.mubr.f32.gmra.mrb[0].mxu0 %v185
  %v282 = vpop.f32.mrb[0].mxu0
  %v283 = vadd.f32 %v154, %v282
  %v284 = vpop.f32.mrb[0].mxu0
  %285 = vmatprep.mubr.f32.mxu0 0.0
  %286 = vmatmul.mubr.f32.gmra.mrb[0].mxu0 %v188
  %v287 = vpop.f32.mrb[0].mxu0
  %v288 = vadd.f32 %v159, %v287
  %v289 = vpop.f32.mrb[0].mxu0
  %290 = vmatprep.mubr.f32.mxu0 0.0
  %291 = vmatmul.mubr.f32.gmra.mrb[0].mxu0 %v191
  %v292 = vpop.f32.mrb[0].mxu0
  %v293 = vadd.f32 %v164, %v292
  %v294 = vpop.f32.mrb[0].mxu0
  %295 = vmatprep.mubr.f32.mxu0 0.0
  %296 = vmatmul.mubr.f32.gmra.mrb[0].mxu0 %v194
  %v297 = vpop.f32.mrb[0].mxu0
  %v298 = vadd.f32 %v169, %v297
  %v299 = vpop.f32.mrb[0].mxu0
  %300 = vdwg.mxu0
  %v301 = vld [vmem:[%s4] sm:$0xff]
  %v302 = vld [vmem:[%s4 + $0x8] sm:$0xff]
  %v303 = vld [vmem:[%s4 + $0x10] sm:$0xff]
  %v304 = vld [vmem:[%s4 + $0x18] sm:$0xff]
  %v305 = vld [vmem:[%s4 + $0x20] sm:$0xff]
  %v306 = vld [vmem:[%s4 + $0x28] sm:$0xff]
  %v307 = vld [vmem:[%s4 + $0x30] sm:$0xff]
  %v308 = vld [vmem:[%s4 + $0x38] sm:$0xff]
  %v309 = vld [vmem:[%s4 + $0x40] sm:$0xff]
  %v310 = vld [vmem:[%s4 + $0x48] sm:$0xff]
  %v311 = vld [vmem:[%s4 + $0x50] sm:$0xff]
  %v312 = vld [vmem:[%s4 + $0x58] sm:$0xff]
  %v313 = vld [vmem:[%s4 + $0x60] sm:$0xff]
  %v314 = vld [vmem:[%s4 + $0x68] sm:$0xff]
  %v315 = vld [vmem:[%s4 + $0x70] sm:$0xff]
  %v316 = vld [vmem:[%s4 + $0x78] sm:$0xff]
  %317 = vmatprep.subr.mxu0 0.0
  %318 = vmatpush1.msra.mxu0 %v91
  %319 = vmatprep.subr.mxu0 0.0
  %320 = vmatpush1.msra.mxu0 %v92
  %321 = vmatprep.subr.mxu0 0.0
  %322 = vmatpush1.msra.mxu0 %v93
  %323 = vmatprep.subr.mxu0 0.0
  %324 = vmatpush1.msra.mxu0 %v94
  %325 = vmatprep.subr.mxu0 0.0
  %326 = vmatpush1.msra.mxu0 %v95
  %327 = vmatprep.subr.mxu0 0.0
  %328 = vmatpush1.msra.mxu0 %v96
  %329 = vmatprep.subr.mxu0 0.0
  %330 = vmatpush1.msra.mxu0 %v97
  %331 = vmatprep.subr.mxu0 0.0
  %332 = vmatpush1.msra.mxu0 %v98
  %333 = vmatprep.subr.mxu0 0.0
  %334 = vmatpush1.msra.mxu0 %v99
  %335 = vmatprep.subr.mxu0 0.0
  %336 = vmatpush1.msra.mxu0 %v100
  %337 = vmatprep.subr.mxu0 0.0
  %338 = vmatpush1.msra.mxu0 %v101
  %339 = vmatprep.subr.mxu0 0.0
  %340 = vmatpush1.msra.mxu0 %v102
  %341 = vmatprep.subr.mxu0 0.0
  %342 = vmatpush1.msra.mxu0 %v103
  %343 = vmatprep.subr.mxu0 0.0
  %344 = vmatpush1.msra.mxu0 %v104
  %345 = vmatprep.subr.mxu0 0.0
  %346 = vmatpush1.msra.mxu0 %v105
  %347 = vmatprep.subr.mxu0 0.0
  %348 = vmatpush1.msra.mxu0 %v106
  %349 = vmatprep.subr.mxu0 0.0
  %350 = vmatpush1.msra.mxu0 0.0
  %351 = vmatprep.subr.mxu0 0.0
  %352 = vmatpush1.msra.mxu0 0.0
  %353 = vmatprep.subr.mxu0 0.0
  %354 = vmatpush1.msra.mxu0 0.0
  %355 = vmatprep.subr.mxu0 0.0
  %356 = vmatpush1.msra.mxu0 0.0
  %357 = vmatprep.subr.mxu0 0.0
  %358 = vmatpush1.msra.mxu0 0.0
  %359 = vmatprep.subr.mxu0 0.0
  %360 = vmatpush1.msra.mxu0 0.0
  %361 = vmatprep.subr.mxu0 0.0
  %362 = vmatpush1.msra.mxu0 0.0
  %363 = vmatprep.subr.mxu0 0.0
  %364 = vmatpush1.msra.mxu0 0.0
  %365 = vmatprep.subr.mxu0 0.0
  %366 = vmatpush1.msra.mxu0 0.0
  %367 = vmatprep.subr.mxu0 0.0
  %368 = vmatpush1.msra.mxu0 0.0
  %369 = vmatprep.subr.mxu0 0.0
  %370 = vmatpush1.msra.mxu0 0.0
  %371 = vmatprep.subr.mxu0 0.0
  %372 = vmatpush1.msra.mxu0 0.0
  %373 = vmatprep.subr.mxu0 0.0
  %374 = vmatpush1.msra.mxu0 0.0
  %375 = vmatprep.subr.mxu0 0.0
  %376 = vmatpush1.msra.mxu0 0.0
  %377 = vmatprep.subr.mxu0 0.0
  %378 = vmatpush1.msra.mxu0 0.0
  %379 = vmatprep.subr.mxu0 0.0
  %380 = vmatpush1.msra.mxu0 0.0
  %381 = vmatprep.mubr.f32.mxu0 0.0
  %382 = vmatmul.mubr.f32.gmra.mrb[0].mxu0 %v301
  %v383 = vpop.f32.mrb[0].mxu0
  %v384 = vadd.f32 0.0, %v383
  %v385 = vpop.f32.mrb[0].mxu0
  %386 = vmatprep.mubr.f32.mxu0 0.0
  %387 = vmatmul.mubr.f32.gmra.mrb[0].mxu0 %v302
  %v388 = vpop.f32.mrb[0].mxu0
  %v389 = vadd.f32 0.0, %v388
  %v390 = vpop.f32.mrb[0].mxu0
  %391 = vmatprep.mubr.f32.mxu0 0.0
  %392 = vmatmul.mubr.f32.gmra.mrb[0].mxu0 %v303
  %v393 = vpop.f32.mrb[0].mxu0
  %v394 = vadd.f32 0.0, %v393
  %v395 = vpop.f32.mrb[0].mxu0
  %396 = vmatprep.mubr.f32.mxu0 0.0
  %397 = vmatmul.mubr.f32.gmra.mrb[0].mxu0 %v304
  %v398 = vpop.f32.mrb[0].mxu0
  %v399 = vadd.f32 0.0, %v398
  %v400 = vpop.f32.mrb[0].mxu0
  %401 = vmatprep.mubr.f32.mxu0 0.0
  %402 = vmatmul.mubr.f32.gmra.mrb[0].mxu0 %v305
  %v403 = vpop.f32.mrb[0].mxu0
  %v404 = vadd.f32 0.0, %v403
  %v405 = vpop.f32.mrb[0].mxu0
  %406 = vmatprep.mubr.f32.mxu0 0.0
  %407 = vmatmul.mubr.f32.gmra.mrb[0].mxu0 %v306
  %v408 = vpop.f32.mrb[0].mxu0
  %v409 = vadd.f32 0.0, %v408
  %v410 = vpop.f32.mrb[0].mxu0
  %411 = vmatprep.mubr.f32.mxu0 0.0
  %412 = vmatmul.mubr.f32.gmra.mrb[0].mxu0 %v307
  %v413 = vpop.f32.mrb[0].mxu0
  %v414 = vadd.f32 0.0, %v413
  %v415 = vpop.f32.mrb[0].mxu0
  %416 = vmatprep.mubr.f32.mxu0 0.0
  %417 = vmatmul.mubr.f32.gmra.mrb[0].mxu0 %v308
  %v418 = vpop.f32.mrb[0].mxu0
  %v419 = vadd.f32 0.0, %v418
  %v420 = vpop.f32.mrb[0].mxu0
  %421 = vmatprep.mubr.f32.mxu0 0.0
  %422 = vmatmul.mubr.f32.gmra.mrb[0].mxu0 %v309
  %v423 = vpop.f32.mrb[0].mxu0
  %v424 = vadd.f32 0.0, %v423
  %v425 = vpop.f32.mrb[0].mxu0
  %426 = vmatprep.mubr.f32.mxu0 0.0
  %427 = vmatmul.mubr.f32.gmra.mrb[0].mxu0 %v310
  %v428 = vpop.f32.mrb[0].mxu0
  %v429 = vadd.f32 0.0, %v428
  %v430 = vpop.f32.mrb[0].mxu0
  %431 = vmatprep.mubr.f32.mxu0 0.0
  %432 = vmatmul.mubr.f32.gmra.mrb[0].mxu0 %v311
  %v433 = vpop.f32.mrb[0].mxu0
  %v434 = vadd.f32 0.0, %v433
  %v435 = vpop.f32.mrb[0].mxu0
  %436 = vmatprep.mubr.f32.mxu0 0.0
  %437 = vmatmul.mubr.f32.gmra.mrb[0].mxu0 %v312
  %v438 = vpop.f32.mrb[0].mxu0
  %v439 = vadd.f32 0.0, %v438
  %v440 = vpop.f32.mrb[0].mxu0
  %441 = vmatprep.mubr.f32.mxu0 0.0
  %442 = vmatmul.mubr.f32.gmra.mrb[0].mxu0 %v313
  %v443 = vpop.f32.mrb[0].mxu0
  %v444 = vadd.f32 0.0, %v443
  %v445 = vpop.f32.mrb[0].mxu0
  %446 = vmatprep.mubr.f32.mxu0 0.0
  %447 = vmatmul.mubr.f32.gmra.mrb[0].mxu0 %v314
  %v448 = vpop.f32.mrb[0].mxu0
  %v449 = vadd.f32 0.0, %v448
  %v450 = vpop.f32.mrb[0].mxu0
  %451 = vmatprep.mubr.f32.mxu0 0.0
  %452 = vmatmul.mubr.f32.gmra.mrb[0].mxu0 %v315
  %v453 = vpop.f32.mrb[0].mxu0
  %v454 = vadd.f32 0.0, %v453
  %v455 = vpop.f32.mrb[0].mxu0
  %456 = vmatprep.mubr.f32.mxu0 0.0
  %457 = vmatmul.mubr.f32.gmra.mrb[0].mxu0 %v316
  %v458 = vpop.f32.mrb[0].mxu0
  %v459 = vadd.f32 0.0, %v458
  %v460 = vpop.f32.mrb[0].mxu0
  %461 = vdwg.mxu0
  %v462 = vmul.f32 %v263, %v384
  %v463 = vmul.f32 %v268, %v389
  %v464 = vmul.f32 %v273, %v394
  %v465 = vmul.f32 %v278, %v399
  %v466 = vmul.f32 %v283, %v404
  %v467 = vmul.f32 %v288, %v409
  %v468 = vmul.f32 %v293, %v414
  %v469 = vmul.f32 %v298, %v419
  %v470 = vadd.f32 %v462, %v424
  %v471 = vadd.f32 %v463, %v429
  %v472 = vadd.f32 %v464, %v434
  %v473 = vadd.f32 %v465, %v439
  %v474 = vadd.f32 %v466, %v444
  %v475 = vadd.f32 %v467, %v449
  %v476 = vadd.f32 %v468, %v454
  %v477 = vadd.f32 %v469, %v459
  %v478 = vmax.f32 %v470, 0.0
  %v479 = vmax.f32 %v471, 0.0
  %v480 = vmax.f32 %v472, 0.0
  %v481 = vmax.f32 %v473, 0.0
  %v482 = vmax.f32 %v474, 0.0
  %v483 = vmax.f32 %v475, 0.0
  %v484 = vmax.f32 %v476, 0.0
  %v485 = vmax.f32 %v477, 0.0
  %v486 = vld [vmem:[%s5] sm:$0xff]
  %v487 = vld [vmem:[%s5 + $0x8] sm:$0xff]
  %v488 = vld [vmem:[%s6] sm:$0xff]
  %v489 = vld [vmem:[%s6 + $0x8] sm:$0xff]
  %491 = vset.pattern.permute.xlu0 0
  %492 = vperm.xlu0 %491, %v488
  %v493 = vpop.permute.xlu0 %492
  %496 = vset.pattern.permute.xlu0 0
  %497 = vperm.xlu0 %496, %v489
  %v498 = vpop.permute.xlu0 %497
  %vm500 = vcmask 523264
  %v502 = vsel %vm500, %v486, 0
  %v505 = vsel %vm500, %v487, 0
  %507 = vmatprep.subr.mxu0 0.0
  %508 = vmatpush1.msra.mxu0 %v478
  %509 = vmatprep.subr.mxu0 0.0
  %510 = vmatpush1.msra.mxu0 %v479
  %511 = vmatprep.subr.mxu0 0.0
  %512 = vmatpush1.msra.mxu0 %v480
  %513 = vmatprep.subr.mxu0 0.0
  %514 = vmatpush1.msra.mxu0 %v481
  %515 = vmatprep.subr.mxu0 0.0
  %516 = vmatpush1.msra.mxu0 %v482
  %517 = vmatprep.subr.mxu0 0.0
  %518 = vmatpush1.msra.mxu0 %v483
  %519 = vmatprep.subr.mxu0 0.0
  %520 = vmatpush1.msra.mxu0 %v484
  %521 = vmatprep.subr.mxu0 0.0
  %522 = vmatpush1.msra.mxu0 %v485
  %523 = vmatprep.subr.mxu0 0.0
  %524 = vmatpush1.msra.mxu0 0.0
  %525 = vmatprep.subr.mxu0 0.0
  %526 = vmatpush1.msra.mxu0 0.0
  %527 = vmatprep.subr.mxu0 0.0
  %528 = vmatpush1.msra.mxu0 0.0
  %529 = vmatprep.subr.mxu0 0.0
  %530 = vmatpush1.msra.mxu0 0.0
  %531 = vmatprep.subr.mxu0 0.0
  %532 = vmatpush1.msra.mxu0 0.0
  %533 = vmatprep.subr.mxu0 0.0
  %534 = vmatpush1.msra.mxu0 0.0
  %535 = vmatprep.subr.mxu0 0.0
  %536 = vmatpush1.msra.mxu0 0.0
  %537 = vmatprep.subr.mxu0 0.0
  %538 = vmatpush1.msra.mxu0 0.0
  %539 = vmatprep.subr.mxu0 0.0
  %540 = vmatpush1.msra.mxu0 0.0
  %541 = vmatprep.subr.mxu0 0.0
  %542 = vmatpush1.msra.mxu0 0.0
  %543 = vmatprep.subr.mxu0 0.0
  %544 = vmatpush1.msra.mxu0 0.0
  %545 = vmatprep.subr.mxu0 0.0
  %546 = vmatpush1.msra.mxu0 0.0
  %547 = vmatprep.subr.mxu0 0.0
  %548 = vmatpush1.msra.mxu0 0.0
  %549 = vmatprep.subr.mxu0 0.0
  %550 = vmatpush1.msra.mxu0 0.0
  %551 = vmatprep.subr.mxu0 0.0
  %552 = vmatpush1.msra.mxu0 0.0
  %553 = vmatprep.subr.mxu0 0.0
  %554 = vmatpush1.msra.mxu0 0.0
  %555 = vmatprep.subr.mxu0 0.0
  %556 = vmatpush1.msra.mxu0 0.0
  %557 = vmatprep.subr.mxu0 0.0
  %558 = vmatpush1.msra.mxu0 0.0
  %559 = vmatprep.subr.mxu0 0.0
  %560 = vmatpush1.msra.mxu0 0.0
  %561 = vmatprep.subr.mxu0 0.0
  %562 = vmatpush1.msra.mxu0 0.0
  %563 = vmatprep.subr.mxu0 0.0
  %564 = vmatpush1.msra.mxu0 0.0
  %565 = vmatprep.subr.mxu0 0.0
  %566 = vmatpush1.msra.mxu0 0.0
  %567 = vmatprep.subr.mxu0 0.0
  %568 = vmatpush1.msra.mxu0 0.0
  %569 = vmatprep.subr.mxu0 0.0
  %570 = vmatpush1.msra.mxu0 0.0
  %571 = vmatprep.mubr.f32.mxu0 0.0
  %572 = vmatmul.mubr.f32.gmra.mrb[0].mxu0 %v502
  %v573 = vpop.f32.mrb[0].mxu0
  %v574 = vadd.f32 %v493, %v573
  %v575 = vpop.f32.mrb[0].mxu0
  %576 = vmatprep.mubr.f32.mxu0 0.0
  %577 = vmatmul.mubr.f32.gmra.mrb[0].mxu0 %v505
  %v578 = vpop.f32.mrb[0].mxu0
  %v579 = vadd.f32 %v498, %v578
  %v580 = vpop.f32.mrb[0].mxu0
  %581 = vdwg.mxu0
  %v582 = vld [vmem:[%s7] sm:$0xff]
  %v583 = vld [vmem:[%s7 + $0x8] sm:$0xff]
  %v584 = vld [vmem:[%s7 + $0x10] sm:$0xff]
  %v585 = vld [vmem:[%s7 + $0x18] sm:$0xff]
  %586 = vmatprep.subr.mxu0 0.0
  %587 = vmatpush1.msra.mxu0 %v91
  %588 = vmatprep.subr.mxu0 0.0
  %589 = vmatpush1.msra.mxu0 %v92
  %590 = vmatprep.subr.mxu0 0.0
  %591 = vmatpush1.msra.mxu0 %v93
  %592 = vmatprep.subr.mxu0 0.0
  %593 = vmatpush1.msra.mxu0 %v94
  %594 = vmatprep.subr.mxu0 0.0
  %595 = vmatpush1.msra.mxu0 %v95
  %596 = vmatprep.subr.mxu0 0.0
  %597 = vmatpush1.msra.mxu0 %v96
  %598 = vmatprep.subr.mxu0 0.0
  %599 = vmatpush1.msra.mxu0 %v97
  %600 = vmatprep.subr.mxu0 0.0
  %601 = vmatpush1.msra.mxu0 %v98
  %602 = vmatprep.subr.mxu0 0.0
  %603 = vmatpush1.msra.mxu0 %v99
  %604 = vmatprep.subr.mxu0 0.0
  %605 = vmatpush1.msra.mxu0 %v100
  %606 = vmatprep.subr.mxu0 0.0
  %607 = vmatpush1.msra.mxu0 %v101
  %608 = vmatprep.subr.mxu0 0.0
  %609 = vmatpush1.msra.mxu0 %v102
  %610 = vmatprep.subr.mxu0 0.0
  %611 = vmatpush1.msra.mxu0 %v103
  %612 = vmatprep.subr.mxu0 0.0
  %613 = vmatpush1.msra.mxu0 %v104
  %614 = vmatprep.subr.mxu0 0.0
  %615 = vmatpush1.msra.mxu0 %v105
  %616 = vmatprep.subr.mxu0 0.0
  %617 = vmatpush1.msra.mxu0 %v106
  %618 = vmatprep.subr.mxu0 0.0
  %619 = vmatpush1.msra.mxu0 0.0
  %620 = vmatprep.subr.mxu0 0.0
  %621 = vmatpush1.msra.mxu0 0.0
  %622 = vmatprep.subr.mxu0 0.0
  %623 = vmatpush1.msra.mxu0 0.0
  %624 = vmatprep.subr.mxu0 0.0
  %625 = vmatpush1.msra.mxu0 0.0
  %626 = vmatprep.subr.mxu0 0.0
  %627 = vmatpush1.msra.mxu0 0.0
  %628 = vmatprep.subr.mxu0 0.0
  %629 = vmatpush1.msra.mxu0 0.0
  %630 = vmatprep.subr.mxu0 0.0
  %631 = vmatpush1.msra.mxu0 0.0
  %632 = vmatprep.subr.mxu0 0.0
  %633 = vmatpush1.msra.mxu0 0.0
  %634 = vmatprep.subr.mxu0 0.0
  %635 = vmatpush1.msra.mxu0 0.0
  %636 = vmatprep.subr.mxu0 0.0
  %637 = vmatpush1.msra.mxu0 0.0
  %638 = vmatprep.subr.mxu0 0.0
  %639 = vmatpush1.msra.mxu0 0.0
  %640 = vmatprep.subr.mxu0 0.0
  %641 = vmatpush1.msra.mxu0 0.0
  %642 = vmatprep.subr.mxu0 0.0
  %643 = vmatpush1.msra.mxu0 0.0
  %644 = vmatprep.subr.mxu0 0.0
  %645 = vmatpush1.msra.mxu0 0.0
  %646 = vmatprep.subr.mxu0 0.0
  %647 = vmatpush1.msra.mxu0 0.0
  %648 = vmatprep.subr.mxu0 0.0
  %649 = vmatpush1.msra.mxu0 0.0
  %650 = vmatprep.mubr.f32.mxu0 0.0
  %651 = vmatmul.mubr.f32.gmra.mrb[0].mxu0 %v582
  %v652 = vpop.f32.mrb[0].mxu0
  %v653 = vadd.f32 0.0, %v652
  %v654 = vpop.f32.mrb[0].mxu0
  %655 = vmatprep.mubr.f32.mxu0 0.0
  %656 = vmatmul.mubr.f32.gmra.mrb[0].mxu0 %v583
  %v657 = vpop.f32.mrb[0].mxu0
  %v658 = vadd.f32 0.0, %v657
  %v659 = vpop.f32.mrb[0].mxu0
  %660 = vmatprep.mubr.f32.mxu0 0.0
  %661 = vmatmul.mubr.f32.gmra.mrb[0].mxu0 %v584
  %v662 = vpop.f32.mrb[0].mxu0
  %v663 = vadd.f32 0.0, %v662
  %v664 = vpop.f32.mrb[0].mxu0
  %665 = vmatprep.mubr.f32.mxu0 0.0
  %666 = vmatmul.mubr.f32.gmra.mrb[0].mxu0 %v585
  %v667 = vpop.f32.mrb[0].mxu0
  %v668 = vadd.f32 0.0, %v667
  %v669 = vpop.f32.mrb[0].mxu0
  %670 = vdwg.mxu0
  %v671 = vmul.f32 %v574, %v653
  %v672 = vmul.f32 %v579, %v658
  %v673 = vadd.f32 %v671, %v663
  %v674 = vadd.f32 %v672, %v668
  %v675 = vmax.f32 %v673, 0.0
  %v676 = vmax.f32 %v674, 0.0
  %v677 = vld [vmem:[%s8] sm:$0x1]
  %v678 = vld [vmem:[#allocation2] sm:$0x1]
  %680 = vset.pattern.permute.xlu0 0
  %681 = vperm.xlu0 %680, %v678
  %v682 = vpop.permute.xlu0 %681
  %v684 = vlaneseq
  %v685 = vshrl.u32 %v684, 7
  %v686 = vsub.s32 0, %v685
  %v687 = vrot.slane %v682, %v686
  %vm688 = vcmask 130048
  %v690 = vsel %vm688, %v677, 0
  %692 = vmatprep.subr.mxu0 0.0
  %693 = vmatpush1.msra.mxu0 %v675
  %694 = vmatprep.subr.mxu0 0.0
  %695 = vmatpush1.msra.mxu0 %v676
  %696 = vmatprep.subr.mxu0 0.0
  %697 = vmatpush1.msra.mxu0 0.0
  %698 = vmatprep.subr.mxu0 0.0
  %699 = vmatpush1.msra.mxu0 0.0
  %700 = vmatprep.subr.mxu0 0.0
  %701 = vmatpush1.msra.mxu0 0.0
  %702 = vmatprep.subr.mxu0 0.0
  %703 = vmatpush1.msra.mxu0 0.0
  %704 = vmatprep.subr.mxu0 0.0
  %705 = vmatpush1.msra.mxu0 0.0
  %706 = vmatprep.subr.mxu0 0.0
  %707 = vmatpush1.msra.mxu0 0.0
  %708 = vmatprep.subr.mxu0 0.0
  %709 = vmatpush1.msra.mxu0 0.0
  %710 = vmatprep.subr.mxu0 0.0
  %711 = vmatpush1.msra.mxu0 0.0
  %712 = vmatprep.subr.mxu0 0.0
  %713 = vmatpush1.msra.mxu0 0.0
  %714 = vmatprep.subr.mxu0 0.0
  %715 = vmatpush1.msra.mxu0 0.0
  %716 = vmatprep.subr.mxu0 0.0
  %717 = vmatpush1.msra.mxu0 0.0
  %718 = vmatprep.subr.mxu0 0.0
  %719 = vmatpush1.msra.mxu0 0.0
  %720 = vmatprep.subr.mxu0 0.0
  %721 = vmatpush1.msra.mxu0 0.0
  %722 = vmatprep.subr.mxu0 0.0
  %723 = vmatpush1.msra.mxu0 0.0
  %724 = vmatprep.subr.mxu0 0.0
  %725 = vmatpush1.msra.mxu0 0.0
  %726 = vmatprep.subr.mxu0 0.0
  %727 = vmatpush1.msra.mxu0 0.0
  %728 = vmatprep.subr.mxu0 0.0
  %729 = vmatpush1.msra.mxu0 0.0
  %730 = vmatprep.subr.mxu0 0.0
  %731 = vmatpush1.msra.mxu0 0.0
  %732 = vmatprep.subr.mxu0 0.0
  %733 = vmatpush1.msra.mxu0 0.0
  %734 = vmatprep.subr.mxu0 0.0
  %735 = vmatpush1.msra.mxu0 0.0
  %736 = vmatprep.subr.mxu0 0.0
  %737 = vmatpush1.msra.mxu0 0.0
  %738 = vmatprep.subr.mxu0 0.0
  %739 = vmatpush1.msra.mxu0 0.0
  %740 = vmatprep.subr.mxu0 0.0
  %741 = vmatpush1.msra.mxu0 0.0
  %742 = vmatprep.subr.mxu0 0.0
  %743 = vmatpush1.msra.mxu0 0.0
  %744 = vmatprep.subr.mxu0 0.0
  %745 = vmatpush1.msra.mxu0 0.0
  %746 = vmatprep.subr.mxu0 0.0
  %747 = vmatpush1.msra.mxu0 0.0
  %748 = vmatprep.subr.mxu0 0.0
  %749 = vmatpush1.msra.mxu0 0.0
  %750 = vmatprep.subr.mxu0 0.0
  %751 = vmatpush1.msra.mxu0 0.0
  %752 = vmatprep.subr.mxu0 0.0
  %753 = vmatpush1.msra.mxu0 0.0
  %754 = vmatprep.subr.mxu0 0.0
  %755 = vmatpush1.msra.mxu0 0.0
  %756 = vmatprep.mubr.f32.mxu0 0.0
  %757 = vmatmul.mubr.f32.gmra.mrb[0].mxu0 %v690
  %v758 = vpop.f32.mrb[0].mxu0
  %v759 = vadd.f32 %v687, %v758
  %v760 = vpop.f32.mrb[0].mxu0
  %761 = vdwg.mxu0
  %762 = vst [vmem:[%s10] sm:$0x1] %v759
  // Predicated region
  $region42: #{extractor_mlp_forward.5} parent=0 // pred_check
    _
  $region43: #{extractor_mlp_forward.5} parent=0 // pred_check_branch
    %764 = sbr.rel (0) target = $region45
  $region44: #{extractor_mlp_forward.5} parent=0 // pred_region
    _
  $region45: #{extractor_mlp_forward.5} parent=0 // pred_fallthru
    _
  // Predicated region
  $region46: #{extractor_mlp_forward.5} parent=0 // pred_check
    _
  $region47: #{extractor_mlp_forward.5} parent=0 // pred_check_branch
    %766 = sbr.rel (0) target = $region49
  $region48: #{extractor_mlp_forward.5} parent=0 // pred_region
    _
  $region49: #{extractor_mlp_forward.5} parent=0 // pred_fallthru
    _

</llo_original>
